<compile_context>
chip_gen: v7x
topology: tpu7x:2x2x1
jax: 0.10.0
libtpu: 0.0.40
codegen_flags: <defaults>
</compile_context>

<pallas_src>
import functools

import jax
import jax.numpy as jnp
from jax.experimental import pallas as pl
from jax.experimental.pallas import tpu as pltpu

_MIB = 1024 * 1024
ATTN_DIM = 512          # fixed in the module: nn.Linear(hidden_size, 512)
_SUBLANE_PACK = 16      # bf16 sublane packing: keeps in-kernel reshapes free
_LANE = 128


# ----------------------------------------------------------------------------
# Hardware-aware configuration
# ----------------------------------------------------------------------------
def _tpu_generation():
    try:
        kind = jax.devices()[0].device_kind.lower()
    except Exception:
        return None
    for tag, gen in (("v7", "v7x"), ("v6", "v6e"), ("v5", "v5e")):
        if tag in kind:
            return gen
    return None


def _vmem_capacity_bytes(gen):
    try:
        cap = int(pltpu.get_tpu_info().vmem_capacity_bytes)
        if cap > 0:
            return cap
    except Exception:
        pass
    # Fallbacks: 128 MiB parts (v5e/v6e), 64 MiB per-TC on v7x; conservative
    # 64 MiB when the generation is unknown.
    return {"v5e": 128 * _MIB, "v6e": 128 * _MIB, "v7x": 64 * _MIB}.get(gen, 64 * _MIB)


def _vmem_budget_bytes(gen):
    cap = _vmem_capacity_bytes(gen)
    # ~75% of physical, always leaving >=16 MiB for compiler/internal scratch:
    # -> ~96 MiB on v5e/v6e (128 MiB), ~48 MiB on v7x (64 MiB).
    return min(cap * 3 // 4, cap - 16 * _MIB)


def _pick_tb(B, S_pad, Hp, A, budget_bytes, *, m_tile, prefer_multi_step):
    """Largest TB dividing B whose per-step working set fits the VMEM budget
    (~15% headroom; the footprint already counts double-buffering), preferring
    TB*S aligned to the MXU M tile and (optionally, v7x) an even >=2 step
    count for the megacore-parallel batch axis."""

    def footprint(tb):
        x_blk = 2 * tb * S_pad * Hp * 2            # double-buffered bf16 input
        out_blk = 2 * tb * Hp * 4                  # double-buffered f32 ctx
        weights = Hp * A * 2 + A * 4 + A * 4       # single-buffered W1/b1/W2^T
        interm = (tb * S_pad * A * 4               # f32 MXU accumulator
                  + tb * S_pad * A * 2             # bf16/elementwise copy
                  + tb * S_pad * Hp * 4            # f32 upcast of x for ctx sum
                  + tb * Hp * 4)                   # ctx value
        return x_blk + out_blk + weights + interm

    limit = int(budget_bytes * 0.85)               # ~15% headroom, not 50%
    cands = [tb for tb in range(1, B + 1) if B % tb == 0 and footprint(tb) <= limit]
    if not cands:
        cands = [1]

    pool = cands
    if prefer_multi_step:
        multi = [tb for tb in cands if B // tb >= 2]
        even = [tb for tb in multi if (B // tb) % 2 == 0]
        pool = even or multi or cands

    aligned = ([tb for tb in pool if (tb * S_pad) % m_tile == 0]
               or [tb for tb in pool if tb % 8 == 0 or tb == B]
               or pool)
    return max(aligned)


def _grid_invariant_spec(block_shape):
    """BlockSpec for a weight whose index_map is constant across the grid:
    request single buffering (the second pipeline buffer is dead VMEM)."""
    index_map = lambda i: (0,) * len(block_shape)
    if hasattr(pl, "Buffered"):
        try:
            return pl.BlockSpec(block_shape, index_map, pipeline_mode=pl.Buffered(1))
        except TypeError:
            pass
    return pl.BlockSpec(block_shape, index_map)


# ----------------------------------------------------------------------------
# Kernel
# ----------------------------------------------------------------------------
def head_kernel(x_ref, w1_ref, b1_ref, w2t_ref, ctx_ref, *,
                s_valid, bf16_elementwise):
    tb, s_pad, h_dim = x_ref.shape
    a_dim = w1_ref.shape[1]

    x = x_ref[...]                                   # (TB, S_pad, Hp) bf16
    xb = x.reshape(tb * s_pad, h_dim)                # free: S_pad % 16 == 0

    # Attention MLP hidden: (TB*S, A) on the MXU, bf16 operands, f32 acc.
    h = jnp.dot(xb, w1_ref[...], preferred_element_type=jnp.float32)
    h = h + b1_ref[...]
    if bf16_elementwise:                             # v6e/v7x: bf16 EUP/VPU
        h = h.astype(jnp.bfloat16)
    h = jnp.tanh(h).reshape(tb, s_pad, a_dim)

    # Linear(512, 1) as a VPU broadcast-multiply + lane-axis (XLU) reduce; the
    # reduce accumulates in f32.  (If the XLU ever becomes the binding slot at
    # production shapes, this can move onto the MXU with a 128-wide padded W2.)
    scores = jnp.sum((h * w2t_ref[...]).astype(jnp.float32), axis=-1)  # (TB,S)

    # Mask padded sequence positions (only compiled when S was padded).
    if s_valid != s_pad:
        pos = jax.lax.broadcasted_iota(jnp.int32, (tb, s_pad), 1)
        scores = jnp.where(pos < s_valid, scores, -1e30)

    # Softmax over the sequence axis.  b2 omitted: softmax is shift-invariant.
    scores = scores - jnp.max(scores, axis=-1, keepdims=True)
    e = jnp.exp(scores)
    w = e / jnp.sum(e, axis=-1, keepdims=True)       # exact: denom is (TB,1)

    # context_vector = sum_seq(weights * hidden); accumulate in f32.
    ctx = jnp.sum(w[:, :, None] * x.astype(jnp.float32), axis=1)   # (TB, Hp)
    ctx_ref[...] = ctx.astype(ctx_ref.dtype)


# ----------------------------------------------------------------------------
# Wrapper
# ----------------------------------------------------------------------------
def cross_train_head(hidden, w1, b1, w2, b2, wfc, bfc, *, tb=None):
    """hidden: (B, S, H) float32. Returns logits (B, num_labels)."""
    del b2  # constant shift before softmax over the sequence: a no-op
    B, S, H = hidden.shape
    A = w1.shape[1]

    gen = _tpu_generation()
    budget = _vmem_budget_bytes(gen)
    bf16_ew = gen in ("v6e", "v7x")                  # v5e has no bf16 VPU/EUP
    m_tile = 256 if gen in ("v6e", "v7x") else 128   # MXU M tile
    is_v7x = gen == "v7x"

    # Pad S (sublane packing) and H (lane-dense x / ctx blocks).  Both are
    # no-ops at real BERT shapes (S=512, H=768); padded H columns are zero so
    # they contribute nothing, padded S rows are masked before the softmax.
    S_pad = ((S + _SUBLANE_PACK - 1) // _SUBLANE_PACK) * _SUBLANE_PACK
    Hp = ((H + _LANE - 1) // _LANE) * _LANE
    if S_pad != S or Hp != H:
        hidden = jnp.pad(hidden, ((0, 0), (0, S_pad - S), (0, Hp - H)))
    w1_full = jnp.pad(w1, ((0, Hp - H), (0, 0))) if Hp != H else w1

    total_flops = 2 * B * S_pad * Hp * A
    prefer_multi = is_v7x and B >= 2 and total_flops >= 1e9  # amortize 0.35us/step

    if tb is None:
        tb = _pick_tb(B, S_pad, Hp, A, budget,
                      m_tile=m_tile, prefer_multi_step=prefer_multi)
    assert B % tb == 0, (B, tb)

    ew_dtype = jnp.bfloat16 if bf16_ew else jnp.float32
    hidden_bf = hidden.astype(jnp.bfloat16)          # cast once: halves HBM read
    w1_bf = w1_full.astype(jnp.bfloat16)             # MXU operand
    b1f = jnp.asarray(b1, jnp.float32).reshape(1, A)
    w2t = jnp.asarray(w2, jnp.float32).reshape(1, A).astype(ew_dtype)

    kernel = functools.partial(head_kernel, s_valid=S, bf16_elementwise=bf16_ew)

    grid_spec = pltpu.PrefetchScalarGridSpec(
        num_scalar_prefetch=0,
        grid=(B // tb,),
        in_specs=[
            pl.BlockSpec((tb, S_pad, Hp), lambda i: (i, 0, 0)),  # hidden (bf16)
            _grid_invariant_spec((Hp, A)),                       # W1 (bf16)
            _grid_invariant_spec((1, A)),                        # b1 (f32)
            _grid_invariant_spec((1, A)),                        # W2^T
        ],
        out_specs=pl.BlockSpec((tb, Hp), lambda i: (i, 0)),      # lane-dense ctx
    )

    ctx_pad = pl.pallas_call(
        kernel,
        out_shape=jax.ShapeDtypeStruct((B, Hp), jnp.float32),
        grid_spec=grid_spec,
        compiler_params=pltpu.CompilerParams(
            dimension_semantics=("parallel",),
            vmem_limit_bytes=budget,
        ),
    )(hidden_bf, w1_bf, b1f, w2t)

    ctx = ctx_pad[:, :H]
    # Tiny (B,H)@(H,L) classifier: M and N are far below one MXU tile, so this
    # is better handled by XLA over the whole batch than inside the kernel.
    return ctx @ wfc + bfc


# ----------------------------------------------------------------------------
# References
# ----------------------------------------------------------------------------
def reference_head_f32(hidden, w1, b1, w2, b2, wfc, bfc):
    """Pure-f32 reference mirroring the PyTorch forward semantics exactly."""
    h = jnp.tanh(hidden @ w1 + b1)                 # (B, S, 512)
    s = h @ w2 + b2                                # (B, S, 1)
    w = jax.nn.softmax(s, axis=1)                  # softmax over seq (dim=1)
    ctx = jnp.sum(w * hidden, axis=1)              # (B, H)
    return ctx @ wfc + bfc                         # (B, L)


def reference_head_mixed(hidden, w1, b1, w2, b2, wfc, bfc, *, bf16_elementwise):
    """Reference mirroring the kernel's numeric policy (bf16 hidden + MXU
    operands, optional bf16 tanh/score product, f32 accumulation)."""
    hb = hidden.astype(jnp.bfloat16)
    h = jnp.dot(hb, w1.astype(jnp.bfloat16), preferred_element_type=jnp.float32)
    h = h + b1
    if bf16_elementwise:
        h = h.astype(jnp.bfloat16)
    h = jnp.tanh(h)
    w2e = w2.astype(jnp.bfloat16 if bf16_elementwise else jnp.float32)
    s = jnp.sum((h * w2e.reshape(1, 1, -1)).astype(jnp.float32),
                axis=-1, keepdims=True) + b2
    w = jax.nn.softmax(s, axis=1)
    ctx = jnp.sum(w * hb.astype(jnp.float32), axis=1)
    return ctx @ wfc + bfc


if __name__ == "__main__":
    # Small shapes consistent with the module's forward.
    B, S, H = 16, 8, 32       # batch, seq_len, hidden_size
    A = ATTN_DIM              # attention intermediate (fixed at 512)
    L = 4                     # num_labels

    key = jax.random.PRNGKey(0)
    k_x, k_w1, k_b1, k_w2, k_b2, k_wfc, k_bfc = jax.random.split(key, 7)

    # Synthetic last-layer hidden states (stand-in for BERT output).
    hidden = jax.random.normal(k_x, (B, S, H), dtype=jnp.float32)

    # Deterministic parameter init (nn.Linear-like scale).
    w1 = jax.random.normal(k_w1, (H, A), dtype=jnp.float32) * (1.0 / jnp.sqrt(H))
    b1 = jax.random.normal(k_b1, (1, A), dtype=jnp.float32) * 0.02
    w2 = jax.random.normal(k_w2, (A, 1), dtype=jnp.float32) * (1.0 / jnp.sqrt(A))
    b2 = jax.random.normal(k_b2, (1, 1), dtype=jnp.float32) * 0.02
    wfc = jax.random.normal(k_wfc, (H, L), dtype=jnp.float32) * (1.0 / jnp.sqrt(H))
    bfc = jax.random.normal(k_bfc, (1, L), dtype=jnp.float32) * 0.02

    logits = cross_train_head(hidden, w1, b1, w2, b2, wfc, bfc)
    logits = jax.block_until_ready(logits)
    assert logits.shape == (B, L)

    # Tight check vs. a reference with the same numeric policy.
    bf16_ew = _tpu_generation() in ("v6e", "v7x")
    ref_mixed = reference_head_mixed(hidden, w1, b1, w2, b2, wfc, bfc,
                                     bf16_elementwise=bf16_ew)
    assert bool(jnp.allclose(logits, ref_mixed, atol=2e-2, rtol=2e-2)), (
        logits, ref_mixed)

    # Looser check vs. the exact f32 (PyTorch-semantics) reference; slack
    # covers the bf16 hidden/operand casts.
    ref_f32 = reference_head_f32(hidden, w1, b1, w2, b2, wfc, bfc)
    assert bool(jnp.allclose(logits, ref_f32, atol=6e-2, rtol=6e-2)), (
        logits, ref_f32)

    print("KERNEL_OK")
</pallas_src>

<mosaic_0001>
module attributes {stable_mosaic.version = 11 : i64} {
  func.func @head_kernel(%arg0: i32, %arg1: memref<16x16x128xbf16, #tpu.memory_space<vmem>>, %arg2: memref<128x512xbf16, #tpu.memory_space<vmem>>, %arg3: memref<1x512xf32, #tpu.memory_space<vmem>>, %arg4: memref<1x512xf32, #tpu.memory_space<vmem>>, %arg5: memref<16x128xf32, #tpu.memory_space<vmem>>) attributes {dimension_semantics = [#tpu.dimension_semantics<parallel>], iteration_bounds = array<i64: 1>, scalar_prefetch = 0 : i64, scratch_operands = 0 : i64, tpu.core_type = #tpu.core_type<tc>, window_params = [{transform_indices = @transform_0, window_bounds = array<i64: 16, 16, 128>}, {pipeline_mode = #tpu.pipeline_mode<synchronous>, transform_indices = @transform_1, window_bounds = array<i64: 128, 512>}, {pipeline_mode = #tpu.pipeline_mode<synchronous>, transform_indices = @transform_2, window_bounds = array<i64: 1, 512>}, {pipeline_mode = #tpu.pipeline_mode<synchronous>, transform_indices = @transform_3, window_bounds = array<i64: 1, 512>}, {transform_indices = @transform_4, window_bounds = array<i64: 16, 128>}]} {
    %c0 = arith.constant 0 : index
    %c0_0 = arith.constant 0 : index
    %c0_1 = arith.constant 0 : index
    %0 = vector.load %arg1[%c0, %c0_0, %c0_1] : memref<16x16x128xbf16, #tpu.memory_space<vmem>>, vector<16x16x128xbf16>
    %1 = vector.shape_cast %0 : vector<16x16x128xbf16> to vector<256x128xbf16>
    %c0_2 = arith.constant 0 : index
    %c0_3 = arith.constant 0 : index
    %2 = vector.load %arg2[%c0_2, %c0_3] : memref<128x512xbf16, #tpu.memory_space<vmem>>, vector<128x512xbf16>
    %cst = arith.constant dense<0.000000e+00> : vector<256x512xf32>
    %3 = tpu.matmul %1, %2, %cst {dimension_numbers = #tpu.dot_dimension_numbers<[1], [0], [0], [1], [0, 0, 1, 1], [], []>} : vector<256x128xbf16>, vector<128x512xbf16>, vector<256x512xf32> -> vector<256x512xf32>
    %c0_4 = arith.constant 0 : index
    %c0_5 = arith.constant 0 : index
    %4 = vector.load %arg3[%c0_4, %c0_5] : memref<1x512xf32, #tpu.memory_space<vmem>>, vector<1x512xf32>
    %5 = vector.broadcast %4 : vector<1x512xf32> to vector<256x512xf32>
    %6 = arith.addf %3, %5 : vector<256x512xf32>
    %7 = math.tanh %6 : vector<256x512xf32>
    %8 = vector.shape_cast %7 : vector<256x512xf32> to vector<16x16x512xf32>
    %c0_6 = arith.constant 0 : index
    %c0_7 = arith.constant 0 : index
    %9 = vector.load %arg4[%c0_6, %c0_7] : memref<1x512xf32, #tpu.memory_space<vmem>>, vector<1x512xf32>
    %10 = vector.shape_cast %9 : vector<1x512xf32> to vector<1x1x512xf32>
    %11 = vector.broadcast %10 : vector<1x1x512xf32> to vector<16x16x512xf32>
    %12 = arith.mulf %8, %11 : vector<16x16x512xf32>
    %cst_8 = arith.constant dense<0.000000e+00> : vector<16x16xf32>
    %13 = vector.multi_reduction <add>, %12, %cst_8 [2] : vector<16x16x512xf32> to vector<16x16xf32>
    %14 = tpu.iota {dimensions = array<i32: 1>} : vector<16x16xi32>
    %c8_i32 = arith.constant 8 : i32
    %15 = vector.broadcast %c8_i32 : i32 to vector<16x16xi32>
    %16 = arith.cmpi slt, %14, %15 : vector<16x16xi32>
    %cst_9 = arith.constant -1.000000e+30 : f32
    %17 = vector.broadcast %cst_9 : f32 to vector<16x16xf32>
    %18 = arith.select %16, %13, %17 : vector<16x16xi1>, vector<16x16xf32>
    %cst_10 = arith.constant dense<0xFF800000> : vector<16xf32>
    %19 = vector.multi_reduction <maximumf>, %18, %cst_10 [1] : vector<16x16xf32> to vector<16xf32>
    %20 = vector.shape_cast %19 : vector<16xf32> to vector<16x1xf32>
    %21 = vector.broadcast %20 : vector<16x1xf32> to vector<16x16xf32>
    %22 = arith.subf %18, %21 : vector<16x16xf32>
    %23 = math.exp %22 : vector<16x16xf32>
    %cst_11 = arith.constant dense<0.000000e+00> : vector<16xf32>
    %24 = vector.multi_reduction <add>, %23, %cst_11 [1] : vector<16x16xf32> to vector<16xf32>
    %25 = vector.shape_cast %24 : vector<16xf32> to vector<16x1xf32>
    %26 = vector.broadcast %25 : vector<16x1xf32> to vector<16x16xf32>
    %27 = arith.divf %23, %26 : vector<16x16xf32>
    %28 = vector.shape_cast %27 : vector<16x16xf32> to vector<16x16x1xf32>
    %29 = arith.extf %0 : vector<16x16x128xbf16> to vector<16x16x128xf32>
    %30 = vector.broadcast %28 : vector<16x16x1xf32> to vector<16x16x128xf32>
    %31 = arith.mulf %30, %29 : vector<16x16x128xf32>
    %cst_12 = arith.constant dense<0.000000e+00> : vector<16x128xf32>
    %32 = vector.multi_reduction <add>, %31, %cst_12 [1] : vector<16x16x128xf32> to vector<16x128xf32>
    %c0_13 = arith.constant 0 : index
    %c0_14 = arith.constant 0 : index
    %33 = vector.load %arg5[%c0_13, %c0_14] : memref<16x128xf32, #tpu.memory_space<vmem>>, vector<16x128xf32>
    tpu.vector_store %arg5[%c0_13, %c0_14], %32 {strides = array<i32>} : memref<16x128xf32, #tpu.memory_space<vmem>>, vector<16x128xf32>,
    return
  }
  func.func @transform_0(%arg0: i32) -> (i32, i32, i32) {
    %c0_i32 = arith.constant 0 : i32
    %c0_i32_0 = arith.constant 0 : i32
    %c0_i32_1 = arith.constant 0 : i32
    return %arg0, %c0_i32, %c0_i32_0 : i32, i32, i32
  }
  func.func @transform_1(%arg0: i32) -> (i32, i32) {
    %c0_i32 = arith.constant 0 : i32
    %c0_i32_0 = arith.constant 0 : i32
    %c0_i32_1 = arith.constant 0 : i32
    return %c0_i32, %c0_i32_0 : i32, i32
  }
  func.func @transform_2(%arg0: i32) -> (i32, i32) {
    %c0_i32 = arith.constant 0 : i32
    %c0_i32_0 = arith.constant 0 : i32
    %c0_i32_1 = arith.constant 0 : i32
    return %c0_i32, %c0_i32_0 : i32, i32
  }
  func.func @transform_3(%arg0: i32) -> (i32, i32) {
    %c0_i32 = arith.constant 0 : i32
    %c0_i32_0 = arith.constant 0 : i32
    %c0_i32_1 = arith.constant 0 : i32
    return %c0_i32, %c0_i32_0 : i32, i32
  }
  func.func @transform_4(%arg0: i32) -> (i32, i32) {
    %c0_i32 = arith.constant 0 : i32
    %c0_i32_0 = arith.constant 0 : i32
    return %arg0, %c0_i32 : i32, i32
  }
}

</mosaic_0001>

<llo_original>
// kernel: tpu_custom_call.1
$region0: #{tpu_custom_call.1}
  #allocation0 [shape = 'u32[]', space=smem, size = 0x4, offset = 0x4, fixed_abs, tag = 'smem constant byte address 0x4 - core index']
  #allocation1 [shape = 'u32[144,128]{1,0:T(1,128)}', space=vmem, size = 0x12000, scoped, tag = 'internal scratch']
  %s0 = inlined_call_operand.hbm [shape: bf16[16,16,128], index: 0, kind: input, shape index: {}]
  %s1 = inlined_call_operand.hbm [shape: bf16[128,512], index: 1, kind: input, shape index: {}]
  %s2 = inlined_call_operand.vmem [shape: f32[1,512], index: 2, kind: input, shape index: {}]
  %s3 = inlined_call_operand.vmem [shape: f32[1,512], index: 3, kind: input, shape index: {}]
  %s4 = inlined_call_operand.hbm [shape: f32[16,128], index: 4, kind: output, shape index: {}]
  %s5 = sld [smem:[#allocation0]]
  $region34: #{tpu_custom_call.1} parent=0
    _
  %s7 = ssub.s32 1, %s5
  %s8 = scalar_select 0, %s7, %s5
  $region1: #{tpu_custom_call.1} parent=0
    #allocation2 [shape = 'u8[65536]{0}', space=vmem, size = 0x10000, scoped, tag = 'input window, operand 0, single buffered']
    #allocation3 [shape = 's32[1]{0}', space=sflag, size = 0x4, scoped, tag = 'scoped memory for tpu_custom_call.1']
    #allocation4 [shape = 's32[1]{0}', space=sflag, size = 0x4, scoped, tag = 'scoped memory for tpu_custom_call.1']
    #allocation5 [shape = 'u8[131072]{0}', space=vmem, size = 0x20000, scoped, tag = 'input window, operand 1, single buffered']
    #allocation6 [shape = 's32[1]{0}', space=sflag, size = 0x4, scoped, tag = 'scoped memory for tpu_custom_call.1']
    #allocation7 [shape = 'u8[8192]{0}', space=vmem, size = 0x2000, scoped, tag = 'output window, operand 0, single buffered']
    %9 = vsyncpa [#allocation3], 0
    %10 = vsyncpa [#allocation6], 0
    %11 = vsyncpa [#allocation4], 0
    // Predicated region
    $region2: #{tpu_custom_call.1} parent=1 // pred_check
      _
    $region3: #{tpu_custom_call.1} parent=1 // pred_check_branch
      %13 = sbr.rel (0) target = $region5
    $region4: #{tpu_custom_call.1} parent=1 // pred_region
      %s15 = ssub.s32 2048, 2048
      %16 = vsyncadd [#allocation3], %s15
      %s17 = sshll.u32 [#allocation2], 4
      %s18 = int_to_ptr.vmem [resolvable:$true] %s17
      %23 = dma.hbm_to_vmem [thread:$0]  %s0, 2048, %s18, [#allocation3], 64, 64, 4
    $region5: #{tpu_custom_call.1} parent=1 // pred_fallthru
      _
    // Predicated region
    $region6: #{tpu_custom_call.1} parent=1 // pred_check
      _
    $region7: #{tpu_custom_call.1} parent=1 // pred_check_branch
      %25 = sbr.rel (0) target = $region9
    $region8: #{tpu_custom_call.1} parent=1 // pred_region
      %s27 = ssub.s32 4096, 4096
      %28 = vsyncadd [#allocation6], %s27
      %s29 = sshll.u32 [#allocation5], 4
      %s30 = int_to_ptr.vmem [resolvable:$true] %s29
      %35 = dma.hbm_to_vmem [thread:$0]  %s1, 4096, %s30, [#allocation6], 256, 256, 16
    $region9: #{tpu_custom_call.1} parent=1 // pred_fallthru
      _
    // Predicated region
    $region10: #{tpu_custom_call.1} parent=1 // pred_check
      _
    $region11: #{tpu_custom_call.1} parent=1 // pred_check_branch
      %37 = sbr.rel (0) target = $region13
    $region12: #{tpu_custom_call.1} parent=1 // pred_region
      _
    $region13: #{tpu_custom_call.1} parent=1 // pred_fallthru
      _
    // Predicated region
    $region14: #{tpu_custom_call.1} parent=1 // pred_check
      _
    $region15: #{tpu_custom_call.1} parent=1 // pred_check_branch
      %39 = sbr.rel (0) target = $region17
    $region16: #{tpu_custom_call.1} parent=1 // pred_region
      _
    $region17: #{tpu_custom_call.1} parent=1 // pred_fallthru
      _
    // Predicated region
    $region18: #{tpu_custom_call.1} parent=1 // pred_check
      _
    $region19: #{tpu_custom_call.1} parent=1 // pred_check_branch
      %41 = sbr.rel (0) target = $region21
    $region20: #{tpu_custom_call.1} parent=1 // pred_region
      %42 = dma.done [#allocation3], 2048
    $region21: #{tpu_custom_call.1} parent=1 // pred_fallthru
      _
    // Predicated region
    $region22: #{tpu_custom_call.1} parent=1 // pred_check
      _
    $region23: #{tpu_custom_call.1} parent=1 // pred_check_branch
      %44 = sbr.rel (0) target = $region25
    $region24: #{tpu_custom_call.1} parent=1 // pred_region
      %45 = dma.done [#allocation6], 4096
    $region25: #{tpu_custom_call.1} parent=1 // pred_fallthru
      _
    %v47 = vld [vmem:[#allocation2] sm:$0xf]
    %v48 = vld [vmem:[#allocation2 + $0x4] sm:$0xf]
    %v49 = vld [vmem:[#allocation2 + $0x8] sm:$0xf]
    %v50 = vld [vmem:[#allocation2 + $0xc] sm:$0xf]
    %v51 = vld [vmem:[#allocation2 + $0x10] sm:$0xf]
    %v52 = vld [vmem:[#allocation2 + $0x14] sm:$0xf]
    %v53 = vld [vmem:[#allocation2 + $0x18] sm:$0xf]
    %v54 = vld [vmem:[#allocation2 + $0x1c] sm:$0xf]
    %v55 = vld [vmem:[#allocation2 + $0x20] sm:$0xf]
    %v56 = vld [vmem:[#allocation2 + $0x24] sm:$0xf]
    %v57 = vld [vmem:[#allocation2 + $0x28] sm:$0xf]
    %v58 = vld [vmem:[#allocation2 + $0x2c] sm:$0xf]
    %v59 = vld [vmem:[#allocation2 + $0x30] sm:$0xf]
    %v60 = vld [vmem:[#allocation2 + $0x34] sm:$0xf]
    %v61 = vld [vmem:[#allocation2 + $0x38] sm:$0xf]
    %v62 = vld [vmem:[#allocation2 + $0x3c] sm:$0xf]
    %v63 = vld [vmem:[#allocation2 + $0x40] sm:$0xf]
    %v64 = vld [vmem:[#allocation2 + $0x44] sm:$0xf]
    %v65 = vld [vmem:[#allocation2 + $0x48] sm:$0xf]
    %v66 = vld [vmem:[#allocation2 + $0x4c] sm:$0xf]
    %v67 = vld [vmem:[#allocation2 + $0x50] sm:$0xf]
    %v68 = vld [vmem:[#allocation2 + $0x54] sm:$0xf]
    %v69 = vld [vmem:[#allocation2 + $0x58] sm:$0xf]
    %v70 = vld [vmem:[#allocation2 + $0x5c] sm:$0xf]
    %v71 = vld [vmem:[#allocation2 + $0x60] sm:$0xf]
    %v72 = vld [vmem:[#allocation2 + $0x64] sm:$0xf]
    %v73 = vld [vmem:[#allocation2 + $0x68] sm:$0xf]
    %v74 = vld [vmem:[#allocation2 + $0x6c] sm:$0xf]
    %v75 = vld [vmem:[#allocation2 + $0x70] sm:$0xf]
    %v76 = vld [vmem:[#allocation2 + $0x74] sm:$0xf]
    %v77 = vld [vmem:[#allocation2 + $0x78] sm:$0xf]
    %v78 = vld [vmem:[#allocation2 + $0x7c] sm:$0xf]
    %v79 = vld [vmem:[#allocation5] sm:$0xff]
    %v80 = vld [vmem:[#allocation5 + $0x8] sm:$0xff]
    %v81 = vld [vmem:[#allocation5 + $0x10] sm:$0xff]
    %v82 = vld [vmem:[#allocation5 + $0x18] sm:$0xff]
    %v83 = vld [vmem:[#allocation5 + $0x20] sm:$0xff]
    %v84 = vld [vmem:[#allocation5 + $0x28] sm:$0xff]
    %v85 = vld [vmem:[#allocation5 + $0x30] sm:$0xff]
    %v86 = vld [vmem:[#allocation5 + $0x38] sm:$0xff]
    %v87 = vld [vmem:[#allocation5 + $0x40] sm:$0xff]
    %v88 = vld [vmem:[#allocation5 + $0x48] sm:$0xff]
    %v89 = vld [vmem:[#allocation5 + $0x50] sm:$0xff]
    %v90 = vld [vmem:[#allocation5 + $0x58] sm:$0xff]
    %v91 = vld [vmem:[#allocation5 + $0x60] sm:$0xff]
    %v92 = vld [vmem:[#allocation5 + $0x68] sm:$0xff]
    %v93 = vld [vmem:[#allocation5 + $0x70] sm:$0xff]
    %v94 = vld [vmem:[#allocation5 + $0x78] sm:$0xff]
    %v95 = vld [vmem:[#allocation5 + $0x80] sm:$0xff]
    %v96 = vld [vmem:[#allocation5 + $0x88] sm:$0xff]
    %v97 = vld [vmem:[#allocation5 + $0x90] sm:$0xff]
    %v98 = vld [vmem:[#allocation5 + $0x98] sm:$0xff]
    %v99 = vld [vmem:[#allocation5 + $0xa0] sm:$0xff]
    %v100 = vld [vmem:[#allocation5 + $0xa8] sm:$0xff]
    %v101 = vld [vmem:[#allocation5 + $0xb0] sm:$0xff]
    %v102 = vld [vmem:[#allocation5 + $0xb8] sm:$0xff]
    %v103 = vld [vmem:[#allocation5 + $0xc0] sm:$0xff]
    %v104 = vld [vmem:[#allocation5 + $0xc8] sm:$0xff]
    %v105 = vld [vmem:[#allocation5 + $0xd0] sm:$0xff]
    %v106 = vld [vmem:[#allocation5 + $0xd8] sm:$0xff]
    %v107 = vld [vmem:[#allocation5 + $0xe0] sm:$0xff]
    %v108 = vld [vmem:[#allocation5 + $0xe8] sm:$0xff]
    %v109 = vld [vmem:[#allocation5 + $0xf0] sm:$0xff]
    %v110 = vld [vmem:[#allocation5 + $0xf8] sm:$0xff]
    %v111 = vld [vmem:[%s2] sm:$0xf]
    %v113 = vlaneseq
    %v114 = vshrl.u32 %v113, 7
    %v115 = vsub.s32 0, %v114
    %v116 = vrot.slane %v111, %v115
    %v117 = vlaneseq
    %v118 = vshrl.u32 %v117, 7
    %v119 = vsub.s32 1, %v118
    %v120 = vrot.slane %v111, %v119
    %v121 = vlaneseq
    %v122 = vshrl.u32 %v121, 7
    %v123 = vsub.s32 2, %v122
    %v124 = vrot.slane %v111, %v123
    %v125 = vlaneseq
    %v126 = vshrl.u32 %v125, 7
    %v127 = vsub.s32 3, %v126
    %v128 = vrot.slane %v111, %v127
    %v165 = vunpack.c.l.b16 %v47
    %v166 = vunpack.c.l.b16 %v48
    %v167 = vunpack.c.l.b16 %v49
    %v168 = vunpack.c.l.b16 %v50
    %v169 = vunpack.c.l.b16 %v51
    %v170 = vunpack.c.l.b16 %v52
    %v171 = vunpack.c.l.b16 %v53
    %v172 = vunpack.c.l.b16 %v54
    %v173 = vunpack.c.l.b16 %v55
    %v174 = vunpack.c.l.b16 %v56
    %v175 = vunpack.c.l.b16 %v57
    %v176 = vunpack.c.l.b16 %v58
    %v177 = vunpack.c.l.b16 %v59
    %v178 = vunpack.c.l.b16 %v60
    %v179 = vunpack.c.l.b16 %v61
    %v180 = vunpack.c.l.b16 %v62
    %v181 = vunpack.c.l.b16 %v63
    %v182 = vunpack.c.l.b16 %v64
    %v183 = vunpack.c.l.b16 %v65
    %v184 = vunpack.c.l.b16 %v66
    %v185 = vunpack.c.l.b16 %v67
    %v186 = vunpack.c.l.b16 %v68
    %v187 = vunpack.c.l.b16 %v69
    %v188 = vunpack.c.l.b16 %v70
    %v189 = vunpack.c.l.b16 %v71
    %v190 = vunpack.c.l.b16 %v72
    %v191 = vunpack.c.l.b16 %v73
    %v192 = vunpack.c.l.b16 %v74
    %v193 = vunpack.c.l.b16 %v75
    %v194 = vunpack.c.l.b16 %v76
    %v195 = vunpack.c.l.b16 %v77
    %v196 = vunpack.c.l.b16 %v78
    %v197 = vpack.c.b16 %v166, %v165
    %v198 = vpack.c.b16 %v168, %v167
    %v199 = vpack.c.b16 %v170, %v169
    %v200 = vpack.c.b16 %v172, %v171
    %v201 = vpack.c.b16 %v174, %v173
    %v202 = vpack.c.b16 %v176, %v175
    %v203 = vpack.c.b16 %v178, %v177
    %v204 = vpack.c.b16 %v180, %v179
    %v205 = vpack.c.b16 %v182, %v181
    %v206 = vpack.c.b16 %v184, %v183
    %v207 = vpack.c.b16 %v186, %v185
    %v208 = vpack.c.b16 %v188, %v187
    %v209 = vpack.c.b16 %v190, %v189
    %v210 = vpack.c.b16 %v192, %v191
    %v211 = vpack.c.b16 %v194, %v193
    %v212 = vpack.c.b16 %v196, %v195
    %v261 = vunpack.c.l.b16 %v79
    %v262 = vunpack.c.h.b16 %v79
    %v263 = vunpack.c.l.b16 %v80
    %v264 = vunpack.c.h.b16 %v80
    %v265 = vunpack.c.l.b16 %v81
    %v266 = vunpack.c.h.b16 %v81
    %v267 = vunpack.c.l.b16 %v82
    %v268 = vunpack.c.h.b16 %v82
    %v269 = vunpack.c.l.b16 %v83
    %v270 = vunpack.c.h.b16 %v83
    %v271 = vunpack.c.l.b16 %v84
    %v272 = vunpack.c.h.b16 %v84
    %v273 = vunpack.c.l.b16 %v85
    %v274 = vunpack.c.h.b16 %v85
    %v275 = vunpack.c.l.b16 %v86
    %v276 = vunpack.c.h.b16 %v86
    %v277 = vunpack.c.l.b16 %v87
    %v278 = vunpack.c.h.b16 %v87
    %v279 = vunpack.c.l.b16 %v88
    %v280 = vunpack.c.h.b16 %v88
    %v281 = vunpack.c.l.b16 %v89
    %v282 = vunpack.c.h.b16 %v89
    %v283 = vunpack.c.l.b16 %v90
    %v284 = vunpack.c.h.b16 %v90
    %v285 = vunpack.c.l.b16 %v91
    %v286 = vunpack.c.h.b16 %v91
    %v287 = vunpack.c.l.b16 %v92
    %v288 = vunpack.c.h.b16 %v92
    %v289 = vunpack.c.l.b16 %v93
    %v290 = vunpack.c.h.b16 %v93
    %v291 = vunpack.c.l.b16 %v94
    %v292 = vunpack.c.h.b16 %v94
    %v293 = vunpack.c.l.b16 %v95
    %v294 = vunpack.c.h.b16 %v95
    %v295 = vunpack.c.l.b16 %v96
    %v296 = vunpack.c.h.b16 %v96
    %v297 = vunpack.c.l.b16 %v97
    %v298 = vunpack.c.h.b16 %v97
    %v299 = vunpack.c.l.b16 %v98
    %v300 = vunpack.c.h.b16 %v98
    %v301 = vunpack.c.l.b16 %v99
    %v302 = vunpack.c.h.b16 %v99
    %v303 = vunpack.c.l.b16 %v100
    %v304 = vunpack.c.h.b16 %v100
    %v305 = vunpack.c.l.b16 %v101
    %v306 = vunpack.c.h.b16 %v101
    %v307 = vunpack.c.l.b16 %v102
    %v308 = vunpack.c.h.b16 %v102
    %v309 = vunpack.c.l.b16 %v103
    %v310 = vunpack.c.h.b16 %v103
    %v311 = vunpack.c.l.b16 %v104
    %v312 = vunpack.c.h.b16 %v104
    %v313 = vunpack.c.l.b16 %v105
    %v314 = vunpack.c.h.b16 %v105
    %v315 = vunpack.c.l.b16 %v106
    %v316 = vunpack.c.h.b16 %v106
    %v317 = vunpack.c.l.b16 %v107
    %v318 = vunpack.c.h.b16 %v107
    %v319 = vunpack.c.l.b16 %v108
    %v320 = vunpack.c.h.b16 %v108
    %v321 = vunpack.c.l.b16 %v109
    %v322 = vunpack.c.h.b16 %v109
    %v323 = vunpack.c.l.b16 %v110
    %v324 = vunpack.c.h.b16 %v110
    %v325 = vpack.c.b16 %v265, %v261
    %v326 = vpack.c.b16 %v266, %v262
    %v327 = vpack.c.b16 %v267, %v263
    %v328 = vpack.c.b16 %v268, %v264
    %v329 = vpack.c.b16 %v273, %v269
    %v330 = vpack.c.b16 %v274, %v270
    %v331 = vpack.c.b16 %v275, %v271
    %v332 = vpack.c.b16 %v276, %v272
    %v333 = vpack.c.b16 %v281, %v277
    %v334 = vpack.c.b16 %v282, %v278
    %v335 = vpack.c.b16 %v283, %v279
    %v336 = vpack.c.b16 %v284, %v280
    %v337 = vpack.c.b16 %v289, %v285
    %v338 = vpack.c.b16 %v290, %v286
    %v339 = vpack.c.b16 %v291, %v287
    %v340 = vpack.c.b16 %v292, %v288
    %v341 = vpack.c.b16 %v297, %v293
    %v342 = vpack.c.b16 %v298, %v294
    %v343 = vpack.c.b16 %v299, %v295
    %v344 = vpack.c.b16 %v300, %v296
    %v345 = vpack.c.b16 %v305, %v301
    %v346 = vpack.c.b16 %v306, %v302
    %v347 = vpack.c.b16 %v307, %v303
    %v348 = vpack.c.b16 %v308, %v304
    %v349 = vpack.c.b16 %v313, %v309
    %v350 = vpack.c.b16 %v314, %v310
    %v351 = vpack.c.b16 %v315, %v311
    %v352 = vpack.c.b16 %v316, %v312
    %v353 = vpack.c.b16 %v321, %v317
    %v354 = vpack.c.b16 %v322, %v318
    %v355 = vpack.c.b16 %v323, %v319
    %v356 = vpack.c.b16 %v324, %v320
    %389 = vmatprep.subr.bf16.mxu0 %v326
    %390 = vmatpush1.bf16.msra.mxu0 %v325
    %391 = vmatprep.subr.bf16.mxu0 %v330
    %392 = vmatpush1.bf16.msra.mxu0 %v329
    %393 = vmatprep.subr.bf16.mxu0 %v334
    %394 = vmatpush1.bf16.msra.mxu0 %v333
    %395 = vmatprep.subr.bf16.mxu0 %v338
    %396 = vmatpush1.bf16.msra.mxu0 %v337
    %397 = vmatprep.subr.bf16.mxu0 %v342
    %398 = vmatpush1.bf16.msra.mxu0 %v341
    %399 = vmatprep.subr.bf16.mxu0 %v346
    %400 = vmatpush1.bf16.msra.mxu0 %v345
    %401 = vmatprep.subr.bf16.mxu0 %v350
    %402 = vmatpush1.bf16.msra.mxu0 %v349
    %403 = vmatprep.subr.bf16.mxu0 %v354
    %404 = vmatpush1.bf16.msra.mxu0 %v353
    %405 = vmatprep.subr.bf16.mxu0 0
    %406 = vmatpush1.bf16.msra.mxu0 0
    %407 = vmatprep.subr.bf16.mxu0 0
    %408 = vmatpush1.bf16.msra.mxu0 0
    %409 = vmatprep.subr.bf16.mxu0 0
    %410 = vmatpush1.bf16.msra.mxu0 0
    %411 = vmatprep.subr.bf16.mxu0 0
    %412 = vmatpush1.bf16.msra.mxu0 0
    %413 = vmatprep.subr.bf16.mxu0 0
    %414 = vmatpush1.bf16.msra.mxu0 0
    %415 = vmatprep.subr.bf16.mxu0 0
    %416 = vmatpush1.bf16.msra.mxu0 0
    %417 = vmatprep.subr.bf16.mxu0 0
    %418 = vmatpush1.bf16.msra.mxu0 0
    %419 = vmatprep.subr.bf16.mxu0 0
    %420 = vmatpush1.bf16.msra.mxu0 0
    %421 = vmatprep.mubr.bf16.mxu0 0
    %422 = vmatmul.mubr.bf16.gmra.mrb[0].mxu0 %v197
    %v423 = vpop.f32.mrb[0].mxu0
    %v424 = vadd.f32 %v116, %v423
    %v425 = vpop.f32.mrb[0].mxu0
    %v426 = vadd.f32 %v120, %v425
    %v427 = vpop.f32.mrb[0].mxu0
    %v428 = vadd.f32 %v116, %v427
    %v429 = vpop.f32.mrb[0].mxu0
    %v430 = vadd.f32 %v120, %v429
    %431 = vmatprep.mubr.bf16.mxu0 0
    %432 = vmatmul.mubr.bf16.gmra.mrb[0].mxu0 %v198
    %v433 = vpop.f32.mrb[0].mxu0
    %v434 = vadd.f32 %v116, %v433
    %v435 = vpop.f32.mrb[0].mxu0
    %v436 = vadd.f32 %v120, %v435
    %v437 = vpop.f32.mrb[0].mxu0
    %v438 = vadd.f32 %v116, %v437
    %v439 = vpop.f32.mrb[0].mxu0
    %v440 = vadd.f32 %v120, %v439
    %441 = vmatprep.mubr.bf16.mxu0 0
    %442 = vmatmul.mubr.bf16.gmra.mrb[0].mxu0 %v199
    %v443 = vpop.f32.mrb[0].mxu0
    %v444 = vadd.f32 %v116, %v443
    %v445 = vpop.f32.mrb[0].mxu0
    %v446 = vadd.f32 %v120, %v445
    %v447 = vpop.f32.mrb[0].mxu0
    %v448 = vadd.f32 %v116, %v447
    %v449 = vpop.f32.mrb[0].mxu0
    %v450 = vadd.f32 %v120, %v449
    %451 = vmatprep.mubr.bf16.mxu0 0
    %452 = vmatmul.mubr.bf16.gmra.mrb[0].mxu0 %v200
    %v453 = vpop.f32.mrb[0].mxu0
    %v454 = vadd.f32 %v116, %v453
    %v455 = vpop.f32.mrb[0].mxu0
    %v456 = vadd.f32 %v120, %v455
    %v457 = vpop.f32.mrb[0].mxu0
    %v458 = vadd.f32 %v116, %v457
    %v459 = vpop.f32.mrb[0].mxu0
    %v460 = vadd.f32 %v120, %v459
    %461 = vmatprep.mubr.bf16.mxu0 0
    %462 = vmatmul.mubr.bf16.gmra.mrb[0].mxu0 %v201
    %v463 = vpop.f32.mrb[0].mxu0
    %v464 = vadd.f32 %v116, %v463
    %v465 = vpop.f32.mrb[0].mxu0
    %v466 = vadd.f32 %v120, %v465
    %v467 = vpop.f32.mrb[0].mxu0
    %v468 = vadd.f32 %v116, %v467
    %v469 = vpop.f32.mrb[0].mxu0
    %v470 = vadd.f32 %v120, %v469
    %471 = vmatprep.mubr.bf16.mxu0 0
    %472 = vmatmul.mubr.bf16.gmra.mrb[0].mxu0 %v202
    %v473 = vpop.f32.mrb[0].mxu0
    %v474 = vadd.f32 %v116, %v473
    %v475 = vpop.f32.mrb[0].mxu0
    %v476 = vadd.f32 %v120, %v475
    %v477 = vpop.f32.mrb[0].mxu0
    %v478 = vadd.f32 %v116, %v477
    %v479 = vpop.f32.mrb[0].mxu0
    %v480 = vadd.f32 %v120, %v479
    %481 = vmatprep.mubr.bf16.mxu0 0
    %482 = vmatmul.mubr.bf16.gmra.mrb[0].mxu0 %v203
    %v483 = vpop.f32.mrb[0].mxu0
    %v484 = vadd.f32 %v116, %v483
    %v485 = vpop.f32.mrb[0].mxu0
    %v486 = vadd.f32 %v120, %v485
    %v487 = vpop.f32.mrb[0].mxu0
    %v488 = vadd.f32 %v116, %v487
    %v489 = vpop.f32.mrb[0].mxu0
    %v490 = vadd.f32 %v120, %v489
    %491 = vmatprep.mubr.bf16.mxu0 0
    %492 = vmatmul.mubr.bf16.gmra.mrb[0].mxu0 %v204
    %v493 = vpop.f32.mrb[0].mxu0
    %v494 = vadd.f32 %v116, %v493
    %v495 = vpop.f32.mrb[0].mxu0
    %v496 = vadd.f32 %v120, %v495
    %v497 = vpop.f32.mrb[0].mxu0
    %v498 = vadd.f32 %v116, %v497
    %v499 = vpop.f32.mrb[0].mxu0
    %v500 = vadd.f32 %v120, %v499
    %501 = vmatprep.mubr.bf16.mxu0 0
    %502 = vmatmul.mubr.bf16.gmra.mrb[0].mxu0 %v205
    %v503 = vpop.f32.mrb[0].mxu0
    %v504 = vadd.f32 %v116, %v503
    %v505 = vpop.f32.mrb[0].mxu0
    %v506 = vadd.f32 %v120, %v505
    %v507 = vpop.f32.mrb[0].mxu0
    %v508 = vadd.f32 %v116, %v507
    %v509 = vpop.f32.mrb[0].mxu0
    %v510 = vadd.f32 %v120, %v509
    %511 = vmatprep.mubr.bf16.mxu0 0
    %512 = vmatmul.mubr.bf16.gmra.mrb[0].mxu0 %v206
    %v513 = vpop.f32.mrb[0].mxu0
    %v514 = vadd.f32 %v116, %v513
    %v515 = vpop.f32.mrb[0].mxu0
    %v516 = vadd.f32 %v120, %v515
    %v517 = vpop.f32.mrb[0].mxu0
    %v518 = vadd.f32 %v116, %v517
    %v519 = vpop.f32.mrb[0].mxu0
    %v520 = vadd.f32 %v120, %v519
    %521 = vmatprep.mubr.bf16.mxu0 0
    %522 = vmatmul.mubr.bf16.gmra.mrb[0].mxu0 %v207
    %v523 = vpop.f32.mrb[0].mxu0
    %v524 = vadd.f32 %v116, %v523
    %v525 = vpop.f32.mrb[0].mxu0
    %v526 = vadd.f32 %v120, %v525
    %v527 = vpop.f32.mrb[0].mxu0
    %v528 = vadd.f32 %v116, %v527
    %v529 = vpop.f32.mrb[0].mxu0
    %v530 = vadd.f32 %v120, %v529
    %531 = vmatprep.mubr.bf16.mxu0 0
    %532 = vmatmul.mubr.bf16.gmra.mrb[0].mxu0 %v208
    %v533 = vpop.f32.mrb[0].mxu0
    %v534 = vadd.f32 %v116, %v533
    %v535 = vpop.f32.mrb[0].mxu0
    %v536 = vadd.f32 %v120, %v535
    %v537 = vpop.f32.mrb[0].mxu0
    %v538 = vadd.f32 %v116, %v537
    %v539 = vpop.f32.mrb[0].mxu0
    %v540 = vadd.f32 %v120, %v539
    %541 = vmatprep.mubr.bf16.mxu0 0
    %542 = vmatmul.mubr.bf16.gmra.mrb[0].mxu0 %v209
    %v543 = vpop.f32.mrb[0].mxu0
    %v544 = vadd.f32 %v116, %v543
    %v545 = vpop.f32.mrb[0].mxu0
    %v546 = vadd.f32 %v120, %v545
    %v547 = vpop.f32.mrb[0].mxu0
    %v548 = vadd.f32 %v116, %v547
    %v549 = vpop.f32.mrb[0].mxu0
    %v550 = vadd.f32 %v120, %v549
    %551 = vmatprep.mubr.bf16.mxu0 0
    %552 = vmatmul.mubr.bf16.gmra.mrb[0].mxu0 %v210
    %v553 = vpop.f32.mrb[0].mxu0
    %v554 = vadd.f32 %v116, %v553
    %v555 = vpop.f32.mrb[0].mxu0
    %v556 = vadd.f32 %v120, %v555
    %v557 = vpop.f32.mrb[0].mxu0
    %v558 = vadd.f32 %v116, %v557
    %v559 = vpop.f32.mrb[0].mxu0
    %v560 = vadd.f32 %v120, %v559
    %561 = vmatprep.mubr.bf16.mxu0 0
    %562 = vmatmul.mubr.bf16.gmra.mrb[0].mxu0 %v211
    %v563 = vpop.f32.mrb[0].mxu0
    %v564 = vadd.f32 %v116, %v563
    %v565 = vpop.f32.mrb[0].mxu0
    %v566 = vadd.f32 %v120, %v565
    %v567 = vpop.f32.mrb[0].mxu0
    %v568 = vadd.f32 %v116, %v567
    %v569 = vpop.f32.mrb[0].mxu0
    %v570 = vadd.f32 %v120, %v569
    %571 = vmatprep.mubr.bf16.mxu0 0
    %572 = vmatmul.mubr.bf16.gmra.mrb[0].mxu0 %v212
    %v573 = vpop.f32.mrb[0].mxu0
    %v574 = vadd.f32 %v116, %v573
    %v575 = vpop.f32.mrb[0].mxu0
    %v576 = vadd.f32 %v120, %v575
    %v577 = vpop.f32.mrb[0].mxu0
    %v578 = vadd.f32 %v116, %v577
    %v579 = vpop.f32.mrb[0].mxu0
    %v580 = vadd.f32 %v120, %v579
    %581 = vdwg.mxu0
    %582 = vmatprep.subr.bf16.mxu0 %v328
    %583 = vmatpush1.bf16.msra.mxu0 %v327
    %584 = vmatprep.subr.bf16.mxu0 %v332
    %585 = vmatpush1.bf16.msra.mxu0 %v331
    %586 = vmatprep.subr.bf16.mxu0 %v336
    %587 = vmatpush1.bf16.msra.mxu0 %v335
    %588 = vmatprep.subr.bf16.mxu0 %v340
    %589 = vmatpush1.bf16.msra.mxu0 %v339
    %590 = vmatprep.subr.bf16.mxu0 %v344
    %591 = vmatpush1.bf16.msra.mxu0 %v343
    %592 = vmatprep.subr.bf16.mxu0 %v348
    %593 = vmatpush1.bf16.msra.mxu0 %v347
    %594 = vmatprep.subr.bf16.mxu0 %v352
    %595 = vmatpush1.bf16.msra.mxu0 %v351
    %596 = vmatprep.subr.bf16.mxu0 %v356
    %597 = vmatpush1.bf16.msra.mxu0 %v355
    %598 = vmatprep.subr.bf16.mxu0 0
    %599 = vmatpush1.bf16.msra.mxu0 0
    %600 = vmatprep.subr.bf16.mxu0 0
    %601 = vmatpush1.bf16.msra.mxu0 0
    %602 = vmatprep.subr.bf16.mxu0 0
    %603 = vmatpush1.bf16.msra.mxu0 0
    %604 = vmatprep.subr.bf16.mxu0 0
    %605 = vmatpush1.bf16.msra.mxu0 0
    %606 = vmatprep.subr.bf16.mxu0 0
    %607 = vmatpush1.bf16.msra.mxu0 0
    %608 = vmatprep.subr.bf16.mxu0 0
    %609 = vmatpush1.bf16.msra.mxu0 0
    %610 = vmatprep.subr.bf16.mxu0 0
    %611 = vmatpush1.bf16.msra.mxu0 0
    %612 = vmatprep.subr.bf16.mxu0 0
    %613 = vmatpush1.bf16.msra.mxu0 0
    %614 = vmatprep.mubr.bf16.mxu0 0
    %615 = vmatmul.mubr.bf16.gmra.mrb[0].mxu0 %v197
    %v616 = vpop.f32.mrb[0].mxu0
    %v617 = vadd.f32 %v124, %v616
    %v618 = vpop.f32.mrb[0].mxu0
    %v619 = vadd.f32 %v128, %v618
    %v620 = vpop.f32.mrb[0].mxu0
    %v621 = vadd.f32 %v124, %v620
    %v622 = vpop.f32.mrb[0].mxu0
    %v623 = vadd.f32 %v128, %v622
    %624 = vmatprep.mubr.bf16.mxu0 0
    %625 = vmatmul.mubr.bf16.gmra.mrb[0].mxu0 %v198
    %v626 = vpop.f32.mrb[0].mxu0
    %v627 = vadd.f32 %v124, %v626
    %v628 = vpop.f32.mrb[0].mxu0
    %v629 = vadd.f32 %v128, %v628
    %v630 = vpop.f32.mrb[0].mxu0
    %v631 = vadd.f32 %v124, %v630
    %v632 = vpop.f32.mrb[0].mxu0
    %v633 = vadd.f32 %v128, %v632
    %634 = vmatprep.mubr.bf16.mxu0 0
    %635 = vmatmul.mubr.bf16.gmra.mrb[0].mxu0 %v199
    %v636 = vpop.f32.mrb[0].mxu0
    %v637 = vadd.f32 %v124, %v636
    %v638 = vpop.f32.mrb[0].mxu0
    %v639 = vadd.f32 %v128, %v638
    %v640 = vpop.f32.mrb[0].mxu0
    %v641 = vadd.f32 %v124, %v640
    %v642 = vpop.f32.mrb[0].mxu0
    %v643 = vadd.f32 %v128, %v642
    %644 = vmatprep.mubr.bf16.mxu0 0
    %645 = vmatmul.mubr.bf16.gmra.mrb[0].mxu0 %v200
    %v646 = vpop.f32.mrb[0].mxu0
    %v647 = vadd.f32 %v124, %v646
    %v648 = vpop.f32.mrb[0].mxu0
    %v649 = vadd.f32 %v128, %v648
    %v650 = vpop.f32.mrb[0].mxu0
    %v651 = vadd.f32 %v124, %v650
    %v652 = vpop.f32.mrb[0].mxu0
    %v653 = vadd.f32 %v128, %v652
    %654 = vmatprep.mubr.bf16.mxu0 0
    %655 = vmatmul.mubr.bf16.gmra.mrb[0].mxu0 %v201
    %v656 = vpop.f32.mrb[0].mxu0
    %v657 = vadd.f32 %v124, %v656
    %v658 = vpop.f32.mrb[0].mxu0
    %v659 = vadd.f32 %v128, %v658
    %v660 = vpop.f32.mrb[0].mxu0
    %v661 = vadd.f32 %v124, %v660
    %v662 = vpop.f32.mrb[0].mxu0
    %v663 = vadd.f32 %v128, %v662
    %664 = vmatprep.mubr.bf16.mxu0 0
    %665 = vmatmul.mubr.bf16.gmra.mrb[0].mxu0 %v202
    %v666 = vpop.f32.mrb[0].mxu0
    %v667 = vadd.f32 %v124, %v666
    %v668 = vpop.f32.mrb[0].mxu0
    %v669 = vadd.f32 %v128, %v668
    %v670 = vpop.f32.mrb[0].mxu0
    %v671 = vadd.f32 %v124, %v670
    %v672 = vpop.f32.mrb[0].mxu0
    %v673 = vadd.f32 %v128, %v672
    %674 = vmatprep.mubr.bf16.mxu0 0
    %675 = vmatmul.mubr.bf16.gmra.mrb[0].mxu0 %v203
    %v676 = vpop.f32.mrb[0].mxu0
    %v677 = vadd.f32 %v124, %v676
    %v678 = vpop.f32.mrb[0].mxu0
    %v679 = vadd.f32 %v128, %v678
    %v680 = vpop.f32.mrb[0].mxu0
    %v681 = vadd.f32 %v124, %v680
    %v682 = vpop.f32.mrb[0].mxu0
    %v683 = vadd.f32 %v128, %v682
    %684 = vmatprep.mubr.bf16.mxu0 0
    %685 = vmatmul.mubr.bf16.gmra.mrb[0].mxu0 %v204
    %v686 = vpop.f32.mrb[0].mxu0
    %v687 = vadd.f32 %v124, %v686
    %v688 = vpop.f32.mrb[0].mxu0
    %v689 = vadd.f32 %v128, %v688
    %v690 = vpop.f32.mrb[0].mxu0
    %v691 = vadd.f32 %v124, %v690
    %v692 = vpop.f32.mrb[0].mxu0
    %v693 = vadd.f32 %v128, %v692
    %694 = vmatprep.mubr.bf16.mxu0 0
    %695 = vmatmul.mubr.bf16.gmra.mrb[0].mxu0 %v205
    %v696 = vpop.f32.mrb[0].mxu0
    %v697 = vadd.f32 %v124, %v696
    %v698 = vpop.f32.mrb[0].mxu0
    %v699 = vadd.f32 %v128, %v698
    %v700 = vpop.f32.mrb[0].mxu0
    %v701 = vadd.f32 %v124, %v700
    %v702 = vpop.f32.mrb[0].mxu0
    %v703 = vadd.f32 %v128, %v702
    %704 = vmatprep.mubr.bf16.mxu0 0
    %705 = vmatmul.mubr.bf16.gmra.mrb[0].mxu0 %v206
    %v706 = vpop.f32.mrb[0].mxu0
    %v707 = vadd.f32 %v124, %v706
    %v708 = vpop.f32.mrb[0].mxu0
    %v709 = vadd.f32 %v128, %v708
    %v710 = vpop.f32.mrb[0].mxu0
    %v711 = vadd.f32 %v124, %v710
    %v712 = vpop.f32.mrb[0].mxu0
    %v713 = vadd.f32 %v128, %v712
    %714 = vmatprep.mubr.bf16.mxu0 0
    %715 = vmatmul.mubr.bf16.gmra.mrb[0].mxu0 %v207
    %v716 = vpop.f32.mrb[0].mxu0
    %v717 = vadd.f32 %v124, %v716
    %v718 = vpop.f32.mrb[0].mxu0
    %v719 = vadd.f32 %v128, %v718
    %v720 = vpop.f32.mrb[0].mxu0
    %v721 = vadd.f32 %v124, %v720
    %v722 = vpop.f32.mrb[0].mxu0
    %v723 = vadd.f32 %v128, %v722
    %724 = vmatprep.mubr.bf16.mxu0 0
    %725 = vmatmul.mubr.bf16.gmra.mrb[0].mxu0 %v208
    %v726 = vpop.f32.mrb[0].mxu0
    %v727 = vadd.f32 %v124, %v726
    %v728 = vpop.f32.mrb[0].mxu0
    %v729 = vadd.f32 %v128, %v728
    %v730 = vpop.f32.mrb[0].mxu0
    %v731 = vadd.f32 %v124, %v730
    %v732 = vpop.f32.mrb[0].mxu0
    %v733 = vadd.f32 %v128, %v732
    %734 = vmatprep.mubr.bf16.mxu0 0
    %735 = vmatmul.mubr.bf16.gmra.mrb[0].mxu0 %v209
    %v736 = vpop.f32.mrb[0].mxu0
    %v737 = vadd.f32 %v124, %v736
    %v738 = vpop.f32.mrb[0].mxu0
    %v739 = vadd.f32 %v128, %v738
    %v740 = vpop.f32.mrb[0].mxu0
    %v741 = vadd.f32 %v124, %v740
    %v742 = vpop.f32.mrb[0].mxu0
    %v743 = vadd.f32 %v128, %v742
    %744 = vmatprep.mubr.bf16.mxu0 0
    %745 = vmatmul.mubr.bf16.gmra.mrb[0].mxu0 %v210
    %v746 = vpop.f32.mrb[0].mxu0
    %v747 = vadd.f32 %v124, %v746
    %v748 = vpop.f32.mrb[0].mxu0
    %v749 = vadd.f32 %v128, %v748
    %v750 = vpop.f32.mrb[0].mxu0
    %v751 = vadd.f32 %v124, %v750
    %v752 = vpop.f32.mrb[0].mxu0
    %v753 = vadd.f32 %v128, %v752
    %754 = vmatprep.mubr.bf16.mxu0 0
    %755 = vmatmul.mubr.bf16.gmra.mrb[0].mxu0 %v211
    %v756 = vpop.f32.mrb[0].mxu0
    %v757 = vadd.f32 %v124, %v756
    %v758 = vpop.f32.mrb[0].mxu0
    %v759 = vadd.f32 %v128, %v758
    %v760 = vpop.f32.mrb[0].mxu0
    %v761 = vadd.f32 %v124, %v760
    %v762 = vpop.f32.mrb[0].mxu0
    %v763 = vadd.f32 %v128, %v762
    %764 = vmatprep.mubr.bf16.mxu0 0
    %765 = vmatmul.mubr.bf16.gmra.mrb[0].mxu0 %v212
    %v766 = vpop.f32.mrb[0].mxu0
    %v767 = vadd.f32 %v124, %v766
    %v768 = vpop.f32.mrb[0].mxu0
    %v769 = vadd.f32 %v128, %v768
    %v770 = vpop.f32.mrb[0].mxu0
    %v771 = vadd.f32 %v124, %v770
    %v772 = vpop.f32.mrb[0].mxu0
    %v773 = vadd.f32 %v128, %v772
    %774 = vdwg.mxu0
    %v775 = vtanh.pop %v424
    %v776 = vtanh.pop %v426
    %v777 = vtanh.pop %v617
    %v778 = vtanh.pop %v619
    %v779 = vtanh.pop %v428
    %v780 = vtanh.pop %v430
    %v781 = vtanh.pop %v621
    %v782 = vtanh.pop %v623
    %v783 = vtanh.pop %v434
    %v784 = vtanh.pop %v436
    %v785 = vtanh.pop %v627
    %v786 = vtanh.pop %v629
    %v787 = vtanh.pop %v438
    %v788 = vtanh.pop %v440
    %v789 = vtanh.pop %v631
    %v790 = vtanh.pop %v633
    %v791 = vtanh.pop %v444
    %v792 = vtanh.pop %v446
    %v793 = vtanh.pop %v637
    %v794 = vtanh.pop %v639
    %v795 = vtanh.pop %v448
    %v796 = vtanh.pop %v450
    %v797 = vtanh.pop %v641
    %v798 = vtanh.pop %v643
    %v799 = vtanh.pop %v454
    %v800 = vtanh.pop %v456
    %v801 = vtanh.pop %v647
    %v802 = vtanh.pop %v649
    %v803 = vtanh.pop %v458
    %v804 = vtanh.pop %v460
    %v805 = vtanh.pop %v651
    %v806 = vtanh.pop %v653
    %v807 = vtanh.pop %v464
    %v808 = vtanh.pop %v466
    %v809 = vtanh.pop %v657
    %v810 = vtanh.pop %v659
    %v811 = vtanh.pop %v468
    %v812 = vtanh.pop %v470
    %v813 = vtanh.pop %v661
    %v814 = vtanh.pop %v663
    %v815 = vtanh.pop %v474
    %v816 = vtanh.pop %v476
    %v817 = vtanh.pop %v667
    %v818 = vtanh.pop %v669
    %v819 = vtanh.pop %v478
    %v820 = vtanh.pop %v480
    %v821 = vtanh.pop %v671
    %v822 = vtanh.pop %v673
    %v823 = vtanh.pop %v484
    %v824 = vtanh.pop %v486
    %v825 = vtanh.pop %v677
    %v826 = vtanh.pop %v679
    %v827 = vtanh.pop %v488
    %v828 = vtanh.pop %v490
    %v829 = vtanh.pop %v681
    %v830 = vtanh.pop %v683
    %v831 = vtanh.pop %v494
    %v832 = vtanh.pop %v496
    %v833 = vtanh.pop %v687
    %v834 = vtanh.pop %v689
    %v835 = vtanh.pop %v498
    %v836 = vtanh.pop %v500
    %v837 = vtanh.pop %v691
    %v838 = vtanh.pop %v693
    %v839 = vtanh.pop %v504
    %v840 = vtanh.pop %v506
    %v841 = vtanh.pop %v697
    %v842 = vtanh.pop %v699
    %v843 = vtanh.pop %v508
    %v844 = vtanh.pop %v510
    %v845 = vtanh.pop %v701
    %v846 = vtanh.pop %v703
    %v847 = vtanh.pop %v514
    %v848 = vtanh.pop %v516
    %v849 = vtanh.pop %v707
    %v850 = vtanh.pop %v709
    %v851 = vtanh.pop %v518
    %v852 = vtanh.pop %v520
    %v853 = vtanh.pop %v711
    %v854 = vtanh.pop %v713
    %v855 = vtanh.pop %v524
    %v856 = vtanh.pop %v526
    %v857 = vtanh.pop %v717
    %v858 = vtanh.pop %v719
    %v859 = vtanh.pop %v528
    %v860 = vtanh.pop %v530
    %v861 = vtanh.pop %v721
    %v862 = vtanh.pop %v723
    %v863 = vtanh.pop %v534
    %v864 = vtanh.pop %v536
    %v865 = vtanh.pop %v727
    %v866 = vtanh.pop %v729
    %v867 = vtanh.pop %v538
    %v868 = vtanh.pop %v540
    %v869 = vtanh.pop %v731
    %v870 = vtanh.pop %v733
    %v871 = vtanh.pop %v544
    %v872 = vtanh.pop %v546
    %v873 = vtanh.pop %v737
    %v874 = vtanh.pop %v739
    %v875 = vtanh.pop %v548
    %v876 = vtanh.pop %v550
    %v877 = vtanh.pop %v741
    %v878 = vtanh.pop %v743
    %v879 = vtanh.pop %v554
    %v880 = vtanh.pop %v556
    %v881 = vtanh.pop %v747
    %v882 = vtanh.pop %v749
    %v883 = vtanh.pop %v558
    %v884 = vtanh.pop %v560
    %v885 = vtanh.pop %v751
    %v886 = vtanh.pop %v753
    %v887 = vtanh.pop %v564
    %v888 = vtanh.pop %v566
    %v889 = vtanh.pop %v757
    %v890 = vtanh.pop %v759
    %v891 = vtanh.pop %v568
    %v892 = vtanh.pop %v570
    %v893 = vtanh.pop %v761
    %v894 = vtanh.pop %v763
    %v895 = vtanh.pop %v574
    %v896 = vtanh.pop %v576
    %v897 = vtanh.pop %v767
    %v898 = vtanh.pop %v769
    %v899 = vtanh.pop %v578
    %v900 = vtanh.pop %v580
    %v901 = vtanh.pop %v771
    %v902 = vtanh.pop %v773
    %v903 = vld [vmem:[%s3] sm:$0xf]
    %v905 = vlaneseq
    %v906 = vshrl.u32 %v905, 7
    %v907 = vsub.s32 0, %v906
    %v908 = vrot.slane %v903, %v907
    %v909 = vlaneseq
    %v910 = vshrl.u32 %v909, 7
    %v911 = vsub.s32 1, %v910
    %v912 = vrot.slane %v903, %v911
    %v913 = vlaneseq
    %v914 = vshrl.u32 %v913, 7
    %v915 = vsub.s32 2, %v914
    %v916 = vrot.slane %v903, %v915
    %v917 = vlaneseq
    %v918 = vshrl.u32 %v917, 7
    %v919 = vsub.s32 3, %v918
    %v920 = vrot.slane %v903, %v919
    %v925 = vmul.f32 %v775, %v908
    %v926 = vmul.f32 %v776, %v912
    %v927 = vmul.f32 %v777, %v916
    %v928 = vmul.f32 %v778, %v920
    %v929 = vmul.f32 %v779, %v908
    %v930 = vmul.f32 %v780, %v912
    %v931 = vmul.f32 %v781, %v916
    %v932 = vmul.f32 %v782, %v920
    %v933 = vmul.f32 %v783, %v908
    %v934 = vmul.f32 %v784, %v912
    %v935 = vmul.f32 %v785, %v916
    %v936 = vmul.f32 %v786, %v920
    %v937 = vmul.f32 %v787, %v908
    %v938 = vmul.f32 %v788, %v912
    %v939 = vmul.f32 %v789, %v916
    %v940 = vmul.f32 %v790, %v920
    %v941 = vmul.f32 %v791, %v908
    %v942 = vmul.f32 %v792, %v912
    %v943 = vmul.f32 %v793, %v916
    %v944 = vmul.f32 %v794, %v920
    %v945 = vmul.f32 %v795, %v908
    %v946 = vmul.f32 %v796, %v912
    %v947 = vmul.f32 %v797, %v916
    %v948 = vmul.f32 %v798, %v920
    %v949 = vmul.f32 %v799, %v908
    %v950 = vmul.f32 %v800, %v912
    %v951 = vmul.f32 %v801, %v916
    %v952 = vmul.f32 %v802, %v920
    %v953 = vmul.f32 %v803, %v908
    %v954 = vmul.f32 %v804, %v912
    %v955 = vmul.f32 %v805, %v916
    %v956 = vmul.f32 %v806, %v920
    %v957 = vmul.f32 %v807, %v908
    %v958 = vmul.f32 %v808, %v912
    %v959 = vmul.f32 %v809, %v916
    %v960 = vmul.f32 %v810, %v920
    %v961 = vmul.f32 %v811, %v908
    %v962 = vmul.f32 %v812, %v912
    %v963 = vmul.f32 %v813, %v916
    %v964 = vmul.f32 %v814, %v920
    %v965 = vmul.f32 %v815, %v908
    %v966 = vmul.f32 %v816, %v912
    %v967 = vmul.f32 %v817, %v916
    %v968 = vmul.f32 %v818, %v920
    %v969 = vmul.f32 %v819, %v908
    %v970 = vmul.f32 %v820, %v912
    %v971 = vmul.f32 %v821, %v916
    %v972 = vmul.f32 %v822, %v920
    %v973 = vmul.f32 %v823, %v908
    %v974 = vmul.f32 %v824, %v912
    %v975 = vmul.f32 %v825, %v916
    %v976 = vmul.f32 %v826, %v920
    %v977 = vmul.f32 %v827, %v908
    %v978 = vmul.f32 %v828, %v912
    %v979 = vmul.f32 %v829, %v916
    %v980 = vmul.f32 %v830, %v920
    %v981 = vmul.f32 %v831, %v908
    %v982 = vmul.f32 %v832, %v912
    %v983 = vmul.f32 %v833, %v916
    %v984 = vmul.f32 %v834, %v920
    %v985 = vmul.f32 %v835, %v908
    %v986 = vmul.f32 %v836, %v912
    %v987 = vmul.f32 %v837, %v916
    %v988 = vmul.f32 %v838, %v920
    %v989 = vmul.f32 %v839, %v908
    %v990 = vmul.f32 %v840, %v912
    %v991 = vmul.f32 %v841, %v916
    %v992 = vmul.f32 %v842, %v920
    %v993 = vmul.f32 %v843, %v908
    %v994 = vmul.f32 %v844, %v912
    %v995 = vmul.f32 %v845, %v916
    %v996 = vmul.f32 %v846, %v920
    %v997 = vmul.f32 %v847, %v908
    %v998 = vmul.f32 %v848, %v912
    %v999 = vmul.f32 %v849, %v916
    %v1000 = vmul.f32 %v850, %v920
    %v1001 = vmul.f32 %v851, %v908
    %v1002 = vmul.f32 %v852, %v912
    %v1003 = vmul.f32 %v853, %v916
    %v1004 = vmul.f32 %v854, %v920
    %v1005 = vmul.f32 %v855, %v908
    %v1006 = vmul.f32 %v856, %v912
    %v1007 = vmul.f32 %v857, %v916
    %v1008 = vmul.f32 %v858, %v920
    %v1009 = vmul.f32 %v859, %v908
    %v1010 = vmul.f32 %v860, %v912
    %v1011 = vmul.f32 %v861, %v916
    %v1012 = vmul.f32 %v862, %v920
    %v1013 = vmul.f32 %v863, %v908
    %v1014 = vmul.f32 %v864, %v912
    %v1015 = vmul.f32 %v865, %v916
    %v1016 = vmul.f32 %v866, %v920
    %v1017 = vmul.f32 %v867, %v908
    %v1018 = vmul.f32 %v868, %v912
    %v1019 = vmul.f32 %v869, %v916
    %v1020 = vmul.f32 %v870, %v920
    %v1021 = vmul.f32 %v871, %v908
    %v1022 = vmul.f32 %v872, %v912
    %v1023 = vmul.f32 %v873, %v916
    %v1024 = vmul.f32 %v874, %v920
    %v1025 = vmul.f32 %v875, %v908
    %v1026 = vmul.f32 %v876, %v912
    %v1027 = vmul.f32 %v877, %v916
    %v1028 = vmul.f32 %v878, %v920
    %v1029 = vmul.f32 %v879, %v908
    %v1030 = vmul.f32 %v880, %v912
    %v1031 = vmul.f32 %v881, %v916
    %v1032 = vmul.f32 %v882, %v920
    %v1033 = vmul.f32 %v883, %v908
    %v1034 = vmul.f32 %v884, %v912
    %v1035 = vmul.f32 %v885, %v916
    %v1036 = vmul.f32 %v886, %v920
    %v1037 = vmul.f32 %v887, %v908
    %v1038 = vmul.f32 %v888, %v912
    %v1039 = vmul.f32 %v889, %v916
    %v1040 = vmul.f32 %v890, %v920
    %v1041 = vmul.f32 %v891, %v908
    %v1042 = vmul.f32 %v892, %v912
    %v1043 = vmul.f32 %v893, %v916
    %v1044 = vmul.f32 %v894, %v920
    %v1045 = vmul.f32 %v895, %v908
    %v1046 = vmul.f32 %v896, %v912
    %v1047 = vmul.f32 %v897, %v916
    %v1048 = vmul.f32 %v898, %v920
    %v1049 = vmul.f32 %v899, %v908
    %v1050 = vmul.f32 %v900, %v912
    %v1051 = vmul.f32 %v901, %v916
    %v1052 = vmul.f32 %v902, %v920
    %v1053 = vadd.f32 %v925, %v926
    %v1054 = vadd.f32 %v1053, %v927
    %v1055 = vadd.f32 %v1054, %v928
    %1056 = vadd.xlane.f32.xlu0 %v1055
    %v1057 = vpop.xlane.xlu0 %1056
    %v1058 = vadd.f32 %v929, %v930
    %v1059 = vadd.f32 %v1058, %v931
    %v1060 = vadd.f32 %v1059, %v932
    %1061 = vadd.xlane.f32.xlu0 %v1060
    %v1062 = vpop.xlane.xlu0 %1061
    %v1063 = vadd.f32 %v933, %v934
    %v1064 = vadd.f32 %v1063, %v935
    %v1065 = vadd.f32 %v1064, %v936
    %1066 = vadd.xlane.f32.xlu0 %v1065
    %v1067 = vpop.xlane.xlu0 %1066
    %v1068 = vadd.f32 %v937, %v938
    %v1069 = vadd.f32 %v1068, %v939
    %v1070 = vadd.f32 %v1069, %v940
    %1071 = vadd.xlane.f32.xlu0 %v1070
    %v1072 = vpop.xlane.xlu0 %1071
    %v1073 = vadd.f32 %v941, %v942
    %v1074 = vadd.f32 %v1073, %v943
    %v1075 = vadd.f32 %v1074, %v944
    %1076 = vadd.xlane.f32.xlu0 %v1075
    %v1077 = vpop.xlane.xlu0 %1076
    %v1078 = vadd.f32 %v945, %v946
    %v1079 = vadd.f32 %v1078, %v947
    %v1080 = vadd.f32 %v1079, %v948
    %1081 = vadd.xlane.f32.xlu0 %v1080
    %v1082 = vpop.xlane.xlu0 %1081
    %v1083 = vadd.f32 %v949, %v950
    %v1084 = vadd.f32 %v1083, %v951
    %v1085 = vadd.f32 %v1084, %v952
    %1086 = vadd.xlane.f32.xlu0 %v1085
    %v1087 = vpop.xlane.xlu0 %1086
    %v1088 = vadd.f32 %v953, %v954
    %v1089 = vadd.f32 %v1088, %v955
    %v1090 = vadd.f32 %v1089, %v956
    %1091 = vadd.xlane.f32.xlu0 %v1090
    %v1092 = vpop.xlane.xlu0 %1091
    %v1093 = vadd.f32 %v957, %v958
    %v1094 = vadd.f32 %v1093, %v959
    %v1095 = vadd.f32 %v1094, %v960
    %1096 = vadd.xlane.f32.xlu0 %v1095
    %v1097 = vpop.xlane.xlu0 %1096
    %v1098 = vadd.f32 %v961, %v962
    %v1099 = vadd.f32 %v1098, %v963
    %v1100 = vadd.f32 %v1099, %v964
    %1101 = vadd.xlane.f32.xlu0 %v1100
    %v1102 = vpop.xlane.xlu0 %1101
    %v1103 = vadd.f32 %v965, %v966
    %v1104 = vadd.f32 %v1103, %v967
    %v1105 = vadd.f32 %v1104, %v968
    %1106 = vadd.xlane.f32.xlu0 %v1105
    %v1107 = vpop.xlane.xlu0 %1106
    %v1108 = vadd.f32 %v969, %v970
    %v1109 = vadd.f32 %v1108, %v971
    %v1110 = vadd.f32 %v1109, %v972
    %1111 = vadd.xlane.f32.xlu0 %v1110
    %v1112 = vpop.xlane.xlu0 %1111
    %v1113 = vadd.f32 %v973, %v974
    %v1114 = vadd.f32 %v1113, %v975
    %v1115 = vadd.f32 %v1114, %v976
    %1116 = vadd.xlane.f32.xlu0 %v1115
    %v1117 = vpop.xlane.xlu0 %1116
    %v1118 = vadd.f32 %v977, %v978
    %v1119 = vadd.f32 %v1118, %v979
    %v1120 = vadd.f32 %v1119, %v980
    %1121 = vadd.xlane.f32.xlu0 %v1120
    %v1122 = vpop.xlane.xlu0 %1121
    %v1123 = vadd.f32 %v981, %v982
    %v1124 = vadd.f32 %v1123, %v983
    %v1125 = vadd.f32 %v1124, %v984
    %1126 = vadd.xlane.f32.xlu0 %v1125
    %v1127 = vpop.xlane.xlu0 %1126
    %v1128 = vadd.f32 %v985, %v986
    %v1129 = vadd.f32 %v1128, %v987
    %v1130 = vadd.f32 %v1129, %v988
    %1131 = vadd.xlane.f32.xlu0 %v1130
    %v1132 = vpop.xlane.xlu0 %1131
    %v1133 = vadd.f32 %v989, %v990
    %v1134 = vadd.f32 %v1133, %v991
    %v1135 = vadd.f32 %v1134, %v992
    %1136 = vadd.xlane.f32.xlu0 %v1135
    %v1137 = vpop.xlane.xlu0 %1136
    %v1138 = vadd.f32 %v993, %v994
    %v1139 = vadd.f32 %v1138, %v995
    %v1140 = vadd.f32 %v1139, %v996
    %1141 = vadd.xlane.f32.xlu0 %v1140
    %v1142 = vpop.xlane.xlu0 %1141
    %v1143 = vadd.f32 %v997, %v998
    %v1144 = vadd.f32 %v1143, %v999
    %v1145 = vadd.f32 %v1144, %v1000
    %1146 = vadd.xlane.f32.xlu0 %v1145
    %v1147 = vpop.xlane.xlu0 %1146
    %v1148 = vadd.f32 %v1001, %v1002
    %v1149 = vadd.f32 %v1148, %v1003
    %v1150 = vadd.f32 %v1149, %v1004
    %1151 = vadd.xlane.f32.xlu0 %v1150
    %v1152 = vpop.xlane.xlu0 %1151
    %v1153 = vadd.f32 %v1005, %v1006
    %v1154 = vadd.f32 %v1153, %v1007
    %v1155 = vadd.f32 %v1154, %v1008
    %1156 = vadd.xlane.f32.xlu0 %v1155
    %v1157 = vpop.xlane.xlu0 %1156
    %v1158 = vadd.f32 %v1009, %v1010
    %v1159 = vadd.f32 %v1158, %v1011
    %v1160 = vadd.f32 %v1159, %v1012
    %1161 = vadd.xlane.f32.xlu0 %v1160
    %v1162 = vpop.xlane.xlu0 %1161
    %v1163 = vadd.f32 %v1013, %v1014
    %v1164 = vadd.f32 %v1163, %v1015
    %v1165 = vadd.f32 %v1164, %v1016
    %1166 = vadd.xlane.f32.xlu0 %v1165
    %v1167 = vpop.xlane.xlu0 %1166
    %v1168 = vadd.f32 %v1017, %v1018
    %v1169 = vadd.f32 %v1168, %v1019
    %v1170 = vadd.f32 %v1169, %v1020
    %1171 = vadd.xlane.f32.xlu0 %v1170
    %v1172 = vpop.xlane.xlu0 %1171
    %v1173 = vadd.f32 %v1021, %v1022
    %v1174 = vadd.f32 %v1173, %v1023
    %v1175 = vadd.f32 %v1174, %v1024
    %1176 = vadd.xlane.f32.xlu0 %v1175
    %v1177 = vpop.xlane.xlu0 %1176
    %v1178 = vadd.f32 %v1025, %v1026
    %v1179 = vadd.f32 %v1178, %v1027
    %v1180 = vadd.f32 %v1179, %v1028
    %1181 = vadd.xlane.f32.xlu0 %v1180
    %v1182 = vpop.xlane.xlu0 %1181
    %v1183 = vadd.f32 %v1029, %v1030
    %v1184 = vadd.f32 %v1183, %v1031
    %v1185 = vadd.f32 %v1184, %v1032
    %1186 = vadd.xlane.f32.xlu0 %v1185
    %v1187 = vpop.xlane.xlu0 %1186
    %v1188 = vadd.f32 %v1033, %v1034
    %v1189 = vadd.f32 %v1188, %v1035
    %v1190 = vadd.f32 %v1189, %v1036
    %1191 = vadd.xlane.f32.xlu0 %v1190
    %v1192 = vpop.xlane.xlu0 %1191
    %v1193 = vadd.f32 %v1037, %v1038
    %v1194 = vadd.f32 %v1193, %v1039
    %v1195 = vadd.f32 %v1194, %v1040
    %1196 = vadd.xlane.f32.xlu0 %v1195
    %v1197 = vpop.xlane.xlu0 %1196
    %v1198 = vadd.f32 %v1041, %v1042
    %v1199 = vadd.f32 %v1198, %v1043
    %v1200 = vadd.f32 %v1199, %v1044
    %1201 = vadd.xlane.f32.xlu0 %v1200
    %v1202 = vpop.xlane.xlu0 %1201
    %v1203 = vadd.f32 %v1045, %v1046
    %v1204 = vadd.f32 %v1203, %v1047
    %v1205 = vadd.f32 %v1204, %v1048
    %1206 = vadd.xlane.f32.xlu0 %v1205
    %v1207 = vpop.xlane.xlu0 %1206
    %v1208 = vadd.f32 %v1049, %v1050
    %v1209 = vadd.f32 %v1208, %v1051
    %v1210 = vadd.f32 %v1209, %v1052
    %1211 = vadd.xlane.f32.xlu0 %v1210
    %v1212 = vpop.xlane.xlu0 %1211
    %v1213 = vlaneseq
    %v1214 = vand.u32 %v1213, 127
    %vm1215 = vcmp.lt.s32.totalorder %v1214, 8
    %v1248 = vlaneseq
    %v1249 = vshrl.u32 %v1248, 7
    %v1250 = vsub.s32 %v1214, %v1249
    %v1251 = vrot.slane %v1057, %v1250
    %v1252 = vadd.s32 %v1214, 4294967288
    %v1253 = vlaneseq
    %v1254 = vshrl.u32 %v1253, 7
    %v1255 = vsub.s32 %v1252, %v1254
    %v1256 = vrot.slane %v1062, %v1255
    %vm1257 = vcmask 130112
    %v1258 = vsel %vm1257, %v1256, %v1251
    %v1259 = vlaneseq
    %v1260 = vshrl.u32 %v1259, 7
    %v1261 = vsub.s32 %v1214, %v1260
    %v1262 = vrot.slane %v1067, %v1261
    %v1263 = vlaneseq
    %v1264 = vshrl.u32 %v1263, 7
    %v1265 = vsub.s32 %v1252, %v1264
    %v1266 = vrot.slane %v1072, %v1265
    %v1267 = vsel %vm1257, %v1266, %v1262
    %v1268 = vlaneseq
    %v1269 = vshrl.u32 %v1268, 7
    %v1270 = vsub.s32 %v1214, %v1269
    %v1271 = vrot.slane %v1077, %v1270
    %v1272 = vlaneseq
    %v1273 = vshrl.u32 %v1272, 7
    %v1274 = vsub.s32 %v1252, %v1273
    %v1275 = vrot.slane %v1082, %v1274
    %v1276 = vsel %vm1257, %v1275, %v1271
    %v1277 = vlaneseq
    %v1278 = vshrl.u32 %v1277, 7
    %v1279 = vsub.s32 %v1214, %v1278
    %v1280 = vrot.slane %v1087, %v1279
    %v1281 = vlaneseq
    %v1282 = vshrl.u32 %v1281, 7
    %v1283 = vsub.s32 %v1252, %v1282
    %v1284 = vrot.slane %v1092, %v1283
    %v1285 = vsel %vm1257, %v1284, %v1280
    %v1286 = vlaneseq
    %v1287 = vshrl.u32 %v1286, 7
    %v1288 = vsub.s32 %v1214, %v1287
    %v1289 = vrot.slane %v1097, %v1288
    %v1290 = vlaneseq
    %v1291 = vshrl.u32 %v1290, 7
    %v1292 = vsub.s32 %v1252, %v1291
    %v1293 = vrot.slane %v1102, %v1292
    %v1294 = vsel %vm1257, %v1293, %v1289
    %v1295 = vlaneseq
    %v1296 = vshrl.u32 %v1295, 7
    %v1297 = vsub.s32 %v1214, %v1296
    %v1298 = vrot.slane %v1107, %v1297
    %v1299 = vlaneseq
    %v1300 = vshrl.u32 %v1299, 7
    %v1301 = vsub.s32 %v1252, %v1300
    %v1302 = vrot.slane %v1112, %v1301
    %v1303 = vsel %vm1257, %v1302, %v1298
    %v1304 = vlaneseq
    %v1305 = vshrl.u32 %v1304, 7
    %v1306 = vsub.s32 %v1214, %v1305
    %v1307 = vrot.slane %v1117, %v1306
    %v1308 = vlaneseq
    %v1309 = vshrl.u32 %v1308, 7
    %v1310 = vsub.s32 %v1252, %v1309
    %v1311 = vrot.slane %v1122, %v1310
    %v1312 = vsel %vm1257, %v1311, %v1307
    %v1313 = vlaneseq
    %v1314 = vshrl.u32 %v1313, 7
    %v1315 = vsub.s32 %v1214, %v1314
    %v1316 = vrot.slane %v1127, %v1315
    %v1317 = vlaneseq
    %v1318 = vshrl.u32 %v1317, 7
    %v1319 = vsub.s32 %v1252, %v1318
    %v1320 = vrot.slane %v1132, %v1319
    %v1321 = vsel %vm1257, %v1320, %v1316
    %v1322 = vlaneseq
    %v1323 = vshrl.u32 %v1322, 7
    %v1324 = vsub.s32 %v1214, %v1323
    %v1325 = vrot.slane %v1137, %v1324
    %v1326 = vlaneseq
    %v1327 = vshrl.u32 %v1326, 7
    %v1328 = vsub.s32 %v1252, %v1327
    %v1329 = vrot.slane %v1142, %v1328
    %v1330 = vsel %vm1257, %v1329, %v1325
    %v1331 = vlaneseq
    %v1332 = vshrl.u32 %v1331, 7
    %v1333 = vsub.s32 %v1214, %v1332
    %v1334 = vrot.slane %v1147, %v1333
    %v1335 = vlaneseq
    %v1336 = vshrl.u32 %v1335, 7
    %v1337 = vsub.s32 %v1252, %v1336
    %v1338 = vrot.slane %v1152, %v1337
    %v1339 = vsel %vm1257, %v1338, %v1334
    %v1340 = vlaneseq
    %v1341 = vshrl.u32 %v1340, 7
    %v1342 = vsub.s32 %v1214, %v1341
    %v1343 = vrot.slane %v1157, %v1342
    %v1344 = vlaneseq
    %v1345 = vshrl.u32 %v1344, 7
    %v1346 = vsub.s32 %v1252, %v1345
    %v1347 = vrot.slane %v1162, %v1346
    %v1348 = vsel %vm1257, %v1347, %v1343
    %v1349 = vlaneseq
    %v1350 = vshrl.u32 %v1349, 7
    %v1351 = vsub.s32 %v1214, %v1350
    %v1352 = vrot.slane %v1167, %v1351
    %v1353 = vlaneseq
    %v1354 = vshrl.u32 %v1353, 7
    %v1355 = vsub.s32 %v1252, %v1354
    %v1356 = vrot.slane %v1172, %v1355
    %v1357 = vsel %vm1257, %v1356, %v1352
    %v1358 = vlaneseq
    %v1359 = vshrl.u32 %v1358, 7
    %v1360 = vsub.s32 %v1214, %v1359
    %v1361 = vrot.slane %v1177, %v1360
    %v1362 = vlaneseq
    %v1363 = vshrl.u32 %v1362, 7
    %v1364 = vsub.s32 %v1252, %v1363
    %v1365 = vrot.slane %v1182, %v1364
    %v1366 = vsel %vm1257, %v1365, %v1361
    %v1367 = vlaneseq
    %v1368 = vshrl.u32 %v1367, 7
    %v1369 = vsub.s32 %v1214, %v1368
    %v1370 = vrot.slane %v1187, %v1369
    %v1371 = vlaneseq
    %v1372 = vshrl.u32 %v1371, 7
    %v1373 = vsub.s32 %v1252, %v1372
    %v1374 = vrot.slane %v1192, %v1373
    %v1375 = vsel %vm1257, %v1374, %v1370
    %v1376 = vlaneseq
    %v1377 = vshrl.u32 %v1376, 7
    %v1378 = vsub.s32 %v1214, %v1377
    %v1379 = vrot.slane %v1197, %v1378
    %v1380 = vlaneseq
    %v1381 = vshrl.u32 %v1380, 7
    %v1382 = vsub.s32 %v1252, %v1381
    %v1383 = vrot.slane %v1202, %v1382
    %v1384 = vsel %vm1257, %v1383, %v1379
    %v1385 = vlaneseq
    %v1386 = vshrl.u32 %v1385, 7
    %v1387 = vsub.s32 %v1214, %v1386
    %v1388 = vrot.slane %v1207, %v1387
    %v1389 = vlaneseq
    %v1390 = vshrl.u32 %v1389, 7
    %v1391 = vsub.s32 %v1252, %v1390
    %v1392 = vrot.slane %v1212, %v1391
    %v1393 = vsel %vm1257, %v1392, %v1388
    %vm1394 = vcmask 1041409
    %v1395 = vsel %vm1394, %v1267, %v1258
    %vm1396 = vcmask 1042434
    %v1397 = vsel %vm1396, %v1276, %v1395
    %vm1398 = vcmask 1043459
    %v1399 = vsel %vm1398, %v1285, %v1397
    %vm1400 = vcmask 1044484
    %v1401 = vsel %vm1400, %v1294, %v1399
    %vm1402 = vcmask 1045509
    %v1403 = vsel %vm1402, %v1303, %v1401
    %vm1404 = vcmask 1046534
    %v1405 = vsel %vm1404, %v1312, %v1403
    %vm1406 = vcmask 1047559
    %v1407 = vsel %vm1406, %v1321, %v1405
    %v1408 = vsel %vm1394, %v1339, %v1330
    %v1409 = vsel %vm1396, %v1348, %v1408
    %v1410 = vsel %vm1398, %v1357, %v1409
    %v1411 = vsel %vm1400, %v1366, %v1410
    %v1412 = vsel %vm1402, %v1375, %v1411
    %v1413 = vsel %vm1404, %v1384, %v1412
    %v1414 = vsel %vm1406, %v1393, %v1413
    %v1417 = vsel %vm1215, %v1407, -1e+30
    %v1418 = vsel %vm1215, %v1414, -1e+30
    %vm1419 = vcmask 130048
    %v1420 = vsel %vm1419, %v1417, -inf
    %1421 = vmax.xlane.f32.xlu0 %v1420
    %v1422 = vpop.xlane.xlu0 %1421
    %v1423 = vsel %vm1419, %v1418, -inf
    %1424 = vmax.xlane.f32.xlu0 %v1423
    %v1425 = vpop.xlane.xlu0 %1424
    %v1426 = vsub.f32 %v1417, %v1422
    %v1427 = vsub.f32 %v1418, %v1425
    %v1428 = vmul.f32 %v1426, 1.442695
    %v1429 = vpow.pop %v1428
    %v1430 = vmul.f32 %v1427, 1.442695
    %v1431 = vpow.pop %v1430
    %v1432 = vsel %vm1419, %v1429, 0.0
    %1433 = vadd.xlane.f32.xlu0 %v1432
    %v1434 = vpop.xlane.xlu0 %1433
    %v1435 = vsel %vm1419, %v1431, 0.0
    %1436 = vadd.xlane.f32.xlu0 %v1435
    %v1437 = vpop.xlane.xlu0 %1436
    %v1438 = vrcp.pop %v1434
    %v1439 = vmul.f32 %v1429, %v1438
    %v1440 = vrcp.pop %v1437
    %v1441 = vmul.f32 %v1431, %v1440
    %v1442 = vlaneseq
    %v1443 = vshrl.u32 %v1442, 7
    %v1444 = vsub.s32 0, %v1443
    %v1445 = vrot.slane %v1439, %v1444
    %1447 = vbcast.lane.b32.xlu0 %v1445, 256
    %v1448 = vpop.permute.xlu0 %1447
    %s1450 = sor.u32 256, 8
    %1451 = vbcast.lane.b32.xlu0 %v1445, %s1450
    %v1452 = vpop.permute.xlu0 %1451
    %v1453 = vlaneseq
    %v1454 = vshrl.u32 %v1453, 7
    %v1455 = vsub.s32 1, %v1454
    %v1456 = vrot.slane %v1439, %v1455
    %1458 = vbcast.lane.b32.xlu0 %v1456, 256
    %v1459 = vpop.permute.xlu0 %1458
    %s1461 = sor.u32 256, 8
    %1462 = vbcast.lane.b32.xlu0 %v1456, %s1461
    %v1463 = vpop.permute.xlu0 %1462
    %v1464 = vlaneseq
    %v1465 = vshrl.u32 %v1464, 7
    %v1466 = vsub.s32 2, %v1465
    %v1467 = vrot.slane %v1439, %v1466
    %1469 = vbcast.lane.b32.xlu0 %v1467, 256
    %v1470 = vpop.permute.xlu0 %1469
    %s1472 = sor.u32 256, 8
    %1473 = vbcast.lane.b32.xlu0 %v1467, %s1472
    %v1474 = vpop.permute.xlu0 %1473
    %v1475 = vlaneseq
    %v1476 = vshrl.u32 %v1475, 7
    %v1477 = vsub.s32 3, %v1476
    %v1478 = vrot.slane %v1439, %v1477
    %1480 = vbcast.lane.b32.xlu0 %v1478, 256
    %v1481 = vpop.permute.xlu0 %1480
    %s1483 = sor.u32 256, 8
    %1484 = vbcast.lane.b32.xlu0 %v1478, %s1483
    %v1485 = vpop.permute.xlu0 %1484
    %v1486 = vlaneseq
    %v1487 = vshrl.u32 %v1486, 7
    %v1488 = vsub.s32 4, %v1487
    %v1489 = vrot.slane %v1439, %v1488
    %1491 = vbcast.lane.b32.xlu0 %v1489, 256
    %v1492 = vpop.permute.xlu0 %1491
    %s1494 = sor.u32 256, 8
    %1495 = vbcast.lane.b32.xlu0 %v1489, %s1494
    %v1496 = vpop.permute.xlu0 %1495
    %v1497 = vlaneseq
    %v1498 = vshrl.u32 %v1497, 7
    %v1499 = vsub.s32 5, %v1498
    %v1500 = vrot.slane %v1439, %v1499
    %1502 = vbcast.lane.b32.xlu0 %v1500, 256
    %v1503 = vpop.permute.xlu0 %1502
    %s1505 = sor.u32 256, 8
    %1506 = vbcast.lane.b32.xlu0 %v1500, %s1505
    %v1507 = vpop.permute.xlu0 %1506
    %v1508 = vlaneseq
    %v1509 = vshrl.u32 %v1508, 7
    %v1510 = vsub.s32 6, %v1509
    %v1511 = vrot.slane %v1439, %v1510
    %1513 = vbcast.lane.b32.xlu0 %v1511, 256
    %v1514 = vpop.permute.xlu0 %1513
    %s1516 = sor.u32 256, 8
    %1517 = vbcast.lane.b32.xlu0 %v1511, %s1516
    %v1518 = vpop.permute.xlu0 %1517
    %v1519 = vlaneseq
    %v1520 = vshrl.u32 %v1519, 7
    %v1521 = vsub.s32 7, %v1520
    %v1522 = vrot.slane %v1439, %v1521
    %1524 = vbcast.lane.b32.xlu0 %v1522, 256
    %v1525 = vpop.permute.xlu0 %1524
    %s1527 = sor.u32 256, 8
    %1528 = vbcast.lane.b32.xlu0 %v1522, %s1527
    %v1529 = vpop.permute.xlu0 %1528
    %v1530 = vlaneseq
    %v1531 = vshrl.u32 %v1530, 7
    %v1532 = vsub.s32 0, %v1531
    %v1533 = vrot.slane %v1441, %v1532
    %1535 = vbcast.lane.b32.xlu0 %v1533, 256
    %v1536 = vpop.permute.xlu0 %1535
    %s1538 = sor.u32 256, 8
    %1539 = vbcast.lane.b32.xlu0 %v1533, %s1538
    %v1540 = vpop.permute.xlu0 %1539
    %v1541 = vlaneseq
    %v1542 = vshrl.u32 %v1541, 7
    %v1543 = vsub.s32 1, %v1542
    %v1544 = vrot.slane %v1441, %v1543
    %1546 = vbcast.lane.b32.xlu0 %v1544, 256
    %v1547 = vpop.permute.xlu0 %1546
    %s1549 = sor.u32 256, 8
    %1550 = vbcast.lane.b32.xlu0 %v1544, %s1549
    %v1551 = vpop.permute.xlu0 %1550
    %v1552 = vlaneseq
    %v1553 = vshrl.u32 %v1552, 7
    %v1554 = vsub.s32 2, %v1553
    %v1555 = vrot.slane %v1441, %v1554
    %1557 = vbcast.lane.b32.xlu0 %v1555, 256
    %v1558 = vpop.permute.xlu0 %1557
    %s1560 = sor.u32 256, 8
    %1561 = vbcast.lane.b32.xlu0 %v1555, %s1560
    %v1562 = vpop.permute.xlu0 %1561
    %v1563 = vlaneseq
    %v1564 = vshrl.u32 %v1563, 7
    %v1565 = vsub.s32 3, %v1564
    %v1566 = vrot.slane %v1441, %v1565
    %1568 = vbcast.lane.b32.xlu0 %v1566, 256
    %v1569 = vpop.permute.xlu0 %1568
    %s1571 = sor.u32 256, 8
    %1572 = vbcast.lane.b32.xlu0 %v1566, %s1571
    %v1573 = vpop.permute.xlu0 %1572
    %v1574 = vlaneseq
    %v1575 = vshrl.u32 %v1574, 7
    %v1576 = vsub.s32 4, %v1575
    %v1577 = vrot.slane %v1441, %v1576
    %1579 = vbcast.lane.b32.xlu0 %v1577, 256
    %v1580 = vpop.permute.xlu0 %1579
    %s1582 = sor.u32 256, 8
    %1583 = vbcast.lane.b32.xlu0 %v1577, %s1582
    %v1584 = vpop.permute.xlu0 %1583
    %v1585 = vlaneseq
    %v1586 = vshrl.u32 %v1585, 7
    %v1587 = vsub.s32 5, %v1586
    %v1588 = vrot.slane %v1441, %v1587
    %1590 = vbcast.lane.b32.xlu0 %v1588, 256
    %v1591 = vpop.permute.xlu0 %1590
    %s1593 = sor.u32 256, 8
    %1594 = vbcast.lane.b32.xlu0 %v1588, %s1593
    %v1595 = vpop.permute.xlu0 %1594
    %v1596 = vlaneseq
    %v1597 = vshrl.u32 %v1596, 7
    %v1598 = vsub.s32 6, %v1597
    %v1599 = vrot.slane %v1441, %v1598
    %1601 = vbcast.lane.b32.xlu0 %v1599, 256
    %v1602 = vpop.permute.xlu0 %1601
    %s1604 = sor.u32 256, 8
    %1605 = vbcast.lane.b32.xlu0 %v1599, %s1604
    %v1606 = vpop.permute.xlu0 %1605
    %v1607 = vlaneseq
    %v1608 = vshrl.u32 %v1607, 7
    %v1609 = vsub.s32 7, %v1608
    %v1610 = vrot.slane %v1441, %v1609
    %1612 = vbcast.lane.b32.xlu0 %v1610, 256
    %v1613 = vpop.permute.xlu0 %1612
    %s1615 = sor.u32 256, 8
    %1616 = vbcast.lane.b32.xlu0 %v1610, %s1615
    %v1617 = vpop.permute.xlu0 %1616
    %v1618 = vunpack.c.l.bf16 %v47
    %v1619 = vunpack.c.l.bf16 %v48
    %v1620 = vunpack.c.l.bf16 %v49
    %v1621 = vunpack.c.l.bf16 %v50
    %v1622 = vunpack.c.l.bf16 %v51
    %v1623 = vunpack.c.l.bf16 %v52
    %v1624 = vunpack.c.l.bf16 %v53
    %v1625 = vunpack.c.l.bf16 %v54
    %v1626 = vunpack.c.l.bf16 %v55
    %v1627 = vunpack.c.l.bf16 %v56
    %v1628 = vunpack.c.l.bf16 %v57
    %v1629 = vunpack.c.l.bf16 %v58
    %v1630 = vunpack.c.l.bf16 %v59
    %v1631 = vunpack.c.l.bf16 %v60
    %v1632 = vunpack.c.l.bf16 %v61
    %v1633 = vunpack.c.l.bf16 %v62
    %v1634 = vunpack.c.l.bf16 %v63
    %v1635 = vunpack.c.l.bf16 %v64
    %v1636 = vunpack.c.l.bf16 %v65
    %v1637 = vunpack.c.l.bf16 %v66
    %v1638 = vunpack.c.l.bf16 %v67
    %v1639 = vunpack.c.l.bf16 %v68
    %v1640 = vunpack.c.l.bf16 %v69
    %v1641 = vunpack.c.l.bf16 %v70
    %v1642 = vunpack.c.l.bf16 %v71
    %v1643 = vunpack.c.l.bf16 %v72
    %v1644 = vunpack.c.l.bf16 %v73
    %v1645 = vunpack.c.l.bf16 %v74
    %v1646 = vunpack.c.l.bf16 %v75
    %v1647 = vunpack.c.l.bf16 %v76
    %v1648 = vunpack.c.l.bf16 %v77
    %v1649 = vunpack.c.l.bf16 %v78
    %v1650 = vmul.f32 %v1448, %v1618
    %v1651 = vmul.f32 %v1452, %v1619
    %v1652 = vmul.f32 %v1459, %v1620
    %v1653 = vmul.f32 %v1463, %v1621
    %v1654 = vmul.f32 %v1470, %v1622
    %v1655 = vmul.f32 %v1474, %v1623
    %v1656 = vmul.f32 %v1481, %v1624
    %v1657 = vmul.f32 %v1485, %v1625
    %v1658 = vmul.f32 %v1492, %v1626
    %v1659 = vmul.f32 %v1496, %v1627
    %v1660 = vmul.f32 %v1503, %v1628
    %v1661 = vmul.f32 %v1507, %v1629
    %v1662 = vmul.f32 %v1514, %v1630
    %v1663 = vmul.f32 %v1518, %v1631
    %v1664 = vmul.f32 %v1525, %v1632
    %v1665 = vmul.f32 %v1529, %v1633
    %v1666 = vmul.f32 %v1536, %v1634
    %v1667 = vmul.f32 %v1540, %v1635
    %v1668 = vmul.f32 %v1547, %v1636
    %v1669 = vmul.f32 %v1551, %v1637
    %v1670 = vmul.f32 %v1558, %v1638
    %v1671 = vmul.f32 %v1562, %v1639
    %v1672 = vmul.f32 %v1569, %v1640
    %v1673 = vmul.f32 %v1573, %v1641
    %v1674 = vmul.f32 %v1580, %v1642
    %v1675 = vmul.f32 %v1584, %v1643
    %v1676 = vmul.f32 %v1591, %v1644
    %v1677 = vmul.f32 %v1595, %v1645
    %v1678 = vmul.f32 %v1602, %v1646
    %v1679 = vmul.f32 %v1606, %v1647
    %v1680 = vmul.f32 %v1613, %v1648
    %v1681 = vmul.f32 %v1617, %v1649
    %v1682 = vadd.f32 %v1650, %v1651
    %v1683 = vrot.slane %v1682, 4
    %v1684 = vadd.f32 %v1682, %v1683
    %v1685 = vrot.slane %v1684, 2
    %v1686 = vadd.f32 %v1684, %v1685
    %v1687 = vrot.slane %v1686, 1
    %v1688 = vadd.f32 %v1686, %v1687
    %v1689 = vadd.f32 %v1652, %v1653
    %v1690 = vrot.slane %v1689, 4
    %v1691 = vadd.f32 %v1689, %v1690
    %v1692 = vrot.slane %v1691, 2
    %v1693 = vadd.f32 %v1691, %v1692
    %v1694 = vrot.slane %v1693, 1
    %v1695 = vadd.f32 %v1693, %v1694
    %v1696 = vadd.f32 %v1654, %v1655
    %v1697 = vrot.slane %v1696, 4
    %v1698 = vadd.f32 %v1696, %v1697
    %v1699 = vrot.slane %v1698, 2
    %v1700 = vadd.f32 %v1698, %v1699
    %v1701 = vrot.slane %v1700, 1
    %v1702 = vadd.f32 %v1700, %v1701
    %v1703 = vadd.f32 %v1656, %v1657
    %v1704 = vrot.slane %v1703, 4
    %v1705 = vadd.f32 %v1703, %v1704
    %v1706 = vrot.slane %v1705, 2
    %v1707 = vadd.f32 %v1705, %v1706
    %v1708 = vrot.slane %v1707, 1
    %v1709 = vadd.f32 %v1707, %v1708
    %v1710 = vadd.f32 %v1658, %v1659
    %v1711 = vrot.slane %v1710, 4
    %v1712 = vadd.f32 %v1710, %v1711
    %v1713 = vrot.slane %v1712, 2
    %v1714 = vadd.f32 %v1712, %v1713
    %v1715 = vrot.slane %v1714, 1
    %v1716 = vadd.f32 %v1714, %v1715
    %v1717 = vadd.f32 %v1660, %v1661
    %v1718 = vrot.slane %v1717, 4
    %v1719 = vadd.f32 %v1717, %v1718
    %v1720 = vrot.slane %v1719, 2
    %v1721 = vadd.f32 %v1719, %v1720
    %v1722 = vrot.slane %v1721, 1
    %v1723 = vadd.f32 %v1721, %v1722
    %v1724 = vadd.f32 %v1662, %v1663
    %v1725 = vrot.slane %v1724, 4
    %v1726 = vadd.f32 %v1724, %v1725
    %v1727 = vrot.slane %v1726, 2
    %v1728 = vadd.f32 %v1726, %v1727
    %v1729 = vrot.slane %v1728, 1
    %v1730 = vadd.f32 %v1728, %v1729
    %v1731 = vadd.f32 %v1664, %v1665
    %v1732 = vrot.slane %v1731, 4
    %v1733 = vadd.f32 %v1731, %v1732
    %v1734 = vrot.slane %v1733, 2
    %v1735 = vadd.f32 %v1733, %v1734
    %v1736 = vrot.slane %v1735, 1
    %v1737 = vadd.f32 %v1735, %v1736
    %v1738 = vadd.f32 %v1666, %v1667
    %v1739 = vrot.slane %v1738, 4
    %v1740 = vadd.f32 %v1738, %v1739
    %v1741 = vrot.slane %v1740, 2
    %v1742 = vadd.f32 %v1740, %v1741
    %v1743 = vrot.slane %v1742, 1
    %v1744 = vadd.f32 %v1742, %v1743
    %v1745 = vadd.f32 %v1668, %v1669
    %v1746 = vrot.slane %v1745, 4
    %v1747 = vadd.f32 %v1745, %v1746
    %v1748 = vrot.slane %v1747, 2
    %v1749 = vadd.f32 %v1747, %v1748
    %v1750 = vrot.slane %v1749, 1
    %v1751 = vadd.f32 %v1749, %v1750
    %v1752 = vadd.f32 %v1670, %v1671
    %v1753 = vrot.slane %v1752, 4
    %v1754 = vadd.f32 %v1752, %v1753
    %v1755 = vrot.slane %v1754, 2
    %v1756 = vadd.f32 %v1754, %v1755
    %v1757 = vrot.slane %v1756, 1
    %v1758 = vadd.f32 %v1756, %v1757
    %v1759 = vadd.f32 %v1672, %v1673
    %v1760 = vrot.slane %v1759, 4
    %v1761 = vadd.f32 %v1759, %v1760
    %v1762 = vrot.slane %v1761, 2
    %v1763 = vadd.f32 %v1761, %v1762
    %v1764 = vrot.slane %v1763, 1
    %v1765 = vadd.f32 %v1763, %v1764
    %v1766 = vadd.f32 %v1674, %v1675
    %v1767 = vrot.slane %v1766, 4
    %v1768 = vadd.f32 %v1766, %v1767
    %v1769 = vrot.slane %v1768, 2
    %v1770 = vadd.f32 %v1768, %v1769
    %v1771 = vrot.slane %v1770, 1
    %v1772 = vadd.f32 %v1770, %v1771
    %v1773 = vadd.f32 %v1676, %v1677
    %v1774 = vrot.slane %v1773, 4
    %v1775 = vadd.f32 %v1773, %v1774
    %v1776 = vrot.slane %v1775, 2
    %v1777 = vadd.f32 %v1775, %v1776
    %v1778 = vrot.slane %v1777, 1
    %v1779 = vadd.f32 %v1777, %v1778
    %v1780 = vadd.f32 %v1678, %v1679
    %v1781 = vrot.slane %v1780, 4
    %v1782 = vadd.f32 %v1780, %v1781
    %v1783 = vrot.slane %v1782, 2
    %v1784 = vadd.f32 %v1782, %v1783
    %v1785 = vrot.slane %v1784, 1
    %v1786 = vadd.f32 %v1784, %v1785
    %v1787 = vadd.f32 %v1680, %v1681
    %v1788 = vrot.slane %v1787, 4
    %v1789 = vadd.f32 %v1787, %v1788
    %v1790 = vrot.slane %v1789, 2
    %v1791 = vadd.f32 %v1789, %v1790
    %v1792 = vrot.slane %v1791, 1
    %v1793 = vadd.f32 %v1791, %v1792
    %v1810 = vsel %vm1394, %v1695, %v1688
    %v1811 = vsel %vm1396, %v1702, %v1810
    %v1812 = vsel %vm1398, %v1709, %v1811
    %v1813 = vsel %vm1400, %v1716, %v1812
    %v1814 = vsel %vm1402, %v1723, %v1813
    %v1815 = vsel %vm1404, %v1730, %v1814
    %v1816 = vsel %vm1406, %v1737, %v1815
    %v1817 = vsel %vm1394, %v1751, %v1744
    %v1818 = vsel %vm1396, %v1758, %v1817
    %v1819 = vsel %vm1398, %v1765, %v1818
    %v1820 = vsel %vm1400, %v1772, %v1819
    %v1821 = vsel %vm1402, %v1779, %v1820
    %v1822 = vsel %vm1404, %v1786, %v1821
    %v1823 = vsel %vm1406, %v1793, %v1822
    %1826 = vst [vmem:[#allocation7] sm:$0xff] %v1816
    %1827 = vst [vmem:[#allocation7 + $0x8] sm:$0xff] %v1823
    // Predicated region
    $region26: #{tpu_custom_call.1} parent=1 // pred_check
      _
    $region27: #{tpu_custom_call.1} parent=1 // pred_check_branch
      %1829 = sbr.rel (0) target = $region29
    $region28: #{tpu_custom_call.1} parent=1 // pred_region
      %s1831 = ssub.s32 256, 256
      %1832 = vsyncadd [#allocation4], %s1831
      %s1833 = sshll.u32 [#allocation7], 4
      %s1834 = int_to_ptr.vmem [resolvable:$true] %s1833
      %1839 = dma.vmem_to_hbm [thread:$0]  %s1834, 256, %s4, [#allocation4], 128, 128, 8
    $region29: #{tpu_custom_call.1} parent=1 // pred_fallthru
      _
    // Predicated region
    $region30: #{tpu_custom_call.1} parent=1 // pred_check
      _
    $region31: #{tpu_custom_call.1} parent=1 // pred_check_branch
      %1841 = sbr.rel (0) target = $region33
    $region32: #{tpu_custom_call.1} parent=1 // pred_region
      %1842 = dma.done [#allocation4], 256
    $region33: #{tpu_custom_call.1} parent=1 // pred_fallthru
      _
    %1843 = vsyncpa [#allocation3], 1
    %1844 = vsyncpa [#allocation6], 1
    %1845 = vsyncpa [#allocation4], 1

</llo_original>
